<compile_context>
chip_gen: v6e
topology: v6e:2x2x1
jax: 0.10.0
libtpu: 0.0.40
codegen_flags: <defaults>
</compile_context>

<pallas_src>
import functools

import jax
import jax.numpy as jnp
from jax.experimental import pallas as pl
from jax.experimental.pallas import tpu as pltpu


# ----------------------------- in-kernel helpers ------------------------------

def _gather_rows(a, idx, k, h):
    """ag[i, j, :] = a[idx[i, j], :] -- vectorised row gather on the VMEM-resident a."""
    tm = idx.shape[0]
    idx_b = jnp.broadcast_to(idx[:, :, None], (tm, k, h)).reshape(tm * k, h)
    ag = jnp.take_along_axis(a, idx_b, axis=0, mode="promise_in_bounds")
    return ag.reshape(tm, k, h)


def _hidden_block(feat, ag, dm, wb, bh, w1, b1, w2, b2):
    """Shared per-tile PGNN_layer math up to the ReLU'd hidden tensor (tm, K, H)."""
    # dist_compute = Nonlinear(1, H, 1) applied to each (node, anchor) scalar distance.
    h1 = jnp.maximum(dm[:, :, None] * w1.reshape(1, 1, -1) + b1.reshape(1, 1, -1), 0.0)
    d = jnp.sum(h1 * w2.reshape(1, 1, -1), axis=-1, keepdims=True) + b2      # (tm, K, 1)
    # Self-feature half of linear_hidden; hidden bias folded in ONCE at (tm, H)
    # (saves a full (tm, K, H) VALU add per tile).
    self_b = jnp.dot(feat, wb, preferred_element_type=jnp.float32) + bh      # (tm, H)
    # hidden = relu(messages @ Wa + self @ Wb + b);  messages @ Wa == d * (feat @ Wa)[idx]
    return jnp.maximum(d * ag + self_b[:, None, :], 0.0)                     # (tm, K, H)


# ----------------------------- kernels ---------------------------------------

def _pre_proj_kernel(x_ref, wpre_ref, bpre_ref, wa_ref, feat_ref, a_ref):
    # Fused linear_pre + first-layer message projection: feat = x @ Wpre.T + b; a = feat @ Wa
    feat = jnp.dot(x_ref[...], wpre_ref[...],
                   preferred_element_type=jnp.float32) + bpre_ref[...]
    feat_ref[...] = feat
    a_ref[...] = jnp.dot(feat, wa_ref[...], preferred_element_type=jnp.float32)


def _proj_kernel(x_ref, wa_ref, a_ref):
    a_ref[...] = jnp.dot(x_ref[...], wa_ref[...], preferred_element_type=jnp.float32)


def _mid_kernel(*refs, inv_k, in_kernel_gather):
    """Non-final PGNN_layer: outputs struct (anchor mean) and fused next-layer projection."""
    if in_kernel_gather:
        (feat_ref, a_ref, idx_ref, dm_ref, wb_ref, bh_ref,
         w1_ref, b1_ref, w2_ref, b2_ref, wan_ref, struct_ref, anext_ref) = refs
        ag = _gather_rows(a_ref[...], idx_ref[...], dm_ref.shape[1], wb_ref.shape[1])
    else:
        (feat_ref, ag_ref, dm_ref, wb_ref, bh_ref,
         w1_ref, b1_ref, w2_ref, b2_ref, wan_ref, struct_ref, anext_ref) = refs
        ag = ag_ref[...]
    hidden = _hidden_block(feat_ref[...], ag, dm_ref[...], wb_ref[...], bh_ref[...],
                           w1_ref[...], b1_ref[...], w2_ref[...], b2_ref[0])
    struct = jnp.sum(hidden, axis=1) * inv_k                     # anchor-mean pooling
    struct_ref[...] = struct
    # Fused projection for the NEXT layer: a_next = struct @ Wa_next (MXU on resident tile).
    anext_ref[...] = jnp.dot(struct, wan_ref[...], preferred_element_type=jnp.float32)


def _final_kernel(*refs, normalize, in_kernel_gather):
    """Final PGNN_layer: linear_out_position (+ fused L2 normalize)."""
    if in_kernel_gather:
        (feat_ref, a_ref, idx_ref, dm_ref, wb_ref, bh_ref,
         w1_ref, b1_ref, w2_ref, b2_ref, wp_ref, bp_ref, pos_ref) = refs
        ag = _gather_rows(a_ref[...], idx_ref[...], dm_ref.shape[1], wb_ref.shape[1])
    else:
        (feat_ref, ag_ref, dm_ref, wb_ref, bh_ref,
         w1_ref, b1_ref, w2_ref, b2_ref, wp_ref, bp_ref, pos_ref) = refs
        ag = ag_ref[...]
    hidden = _hidden_block(feat_ref[...], ag, dm_ref[...], wb_ref[...], bh_ref[...],
                           w1_ref[...], b1_ref[...], w2_ref[...], b2_ref[0])
    pos = jnp.sum(hidden * wp_ref[...].reshape(1, 1, -1), axis=-1) + bp_ref[0]   # (tm, K)
    if normalize:  # fused F.normalize(pos, p=2, dim=-1)
        nrm = jnp.sqrt(jnp.sum(pos * pos, axis=-1, keepdims=True))
        pos = pos / jnp.maximum(nrm, 1e-12)
    pos_ref[...] = pos


# ----------------------------- budgets / probes --------------------------------

def _vmem_capacity_bytes():
    try:
        return int(pltpu.get_tpu_info().vmem_capacity_bytes)
    except Exception:                       # unknown runtime: assume smallest (v7x) VMEM
        return 64 * 1024 * 1024


def _vmem_limit_bytes():
    # ~3/4 of physical VMEM: 96 MiB on v5e/v6e (128 MiB phys), 48 MiB on v7x (64 MiB).
    cap = _vmem_capacity_bytes()
    return int(max(32 * 1024 * 1024, min(96 * 1024 * 1024, (3 * cap) // 4)))


def _cparams(vmem_limit):
    # Node axis "parallel": sharded across v7x's two TensorCores, neutral on v5e/v6e.
    return pltpu.CompilerParams(dimension_semantics=("parallel",),
                                vmem_limit_bytes=int(vmem_limit))


def _pick_tm(n, k, h, d, hn, vmem_limit, resident_bytes, cap=512):
    """Node-tile size from a per-generation VMEM budget (not a flat cap)."""
    # Live bytes per tile row: a few (K, H) f32 temporaries (h1, d*ag, hidden) plus
    # double-buffered feat/dm/idx inputs and struct/a_next outputs.
    per_row = 4 * (8 * k * h + 2 * d + 2 * (h + hn) + 6 * k)
    budget = max(vmem_limit - resident_bytes - (4 << 20), 1 << 20)
    tm = min(budget // per_row, cap, n)
    tm -= tm % 8
    tm = max(tm, 8)
    if n >= 16:                 # keep >=2 grid steps so both v7x TensorCores get work
        half = ((n + 1) // 2 + 7) // 8 * 8
        tm = min(tm, max(8, half))
    return int(tm)


@functools.lru_cache(maxsize=None)
def _gather_probe(n, k, h, tm):
    """True iff the in-kernel row gather lowers on this Mosaic AND is exact for these shapes."""
    def kern(a_ref, idx_ref, o_ref):
        o_ref[...] = _gather_rows(a_ref[...], idx_ref[...], k, h)
    try:
        a = jax.random.normal(jax.random.PRNGKey(0), (n, h), jnp.float32)
        idx = jax.random.randint(jax.random.PRNGKey(1), (tm, k), 0, n, jnp.int32)
        out = pl.pallas_call(
            kern, out_shape=jax.ShapeDtypeStruct((tm, k, h), jnp.float32))(a, idx)
        ref = a[idx.reshape(-1)].reshape(tm, k, h)
        return bool(jnp.array_equal(out, ref))
    except Exception:
        return False


# ----------------------------- wrappers ---------------------------------------

def _pre_proj(x, wpre_t, bpre, wa, *, tm, vmem_limit):
    n, din = x.shape
    f = wpre_t.shape[1]
    h = wa.shape[1]
    return pl.pallas_call(
        _pre_proj_kernel,
        out_shape=(jax.ShapeDtypeStruct((n, f), jnp.float32),
                   jax.ShapeDtypeStruct((n, h), jnp.float32)),
        grid=(n // tm,),
        in_specs=[pl.BlockSpec((tm, din), lambda i: (i, 0)),
                  pl.BlockSpec((din, f), lambda i: (0, 0)),
                  pl.BlockSpec((1, f), lambda i: (0, 0)),
                  pl.BlockSpec((f, h), lambda i: (0, 0))],
        out_specs=(pl.BlockSpec((tm, f), lambda i: (i, 0)),
                   pl.BlockSpec((tm, h), lambda i: (i, 0))),
        compiler_params=_cparams(vmem_limit),
    )(x, wpre_t, bpre, wa)


def _proj(x, wa, *, tm, vmem_limit):
    n, din = x.shape
    h = wa.shape[1]
    return pl.pallas_call(
        _proj_kernel,
        out_shape=jax.ShapeDtypeStruct((n, h), jnp.float32),
        grid=(n // tm,),
        in_specs=[pl.BlockSpec((tm, din), lambda i: (i, 0)),
                  pl.BlockSpec((din, h), lambda i: (0, 0))],
        out_specs=pl.BlockSpec((tm, h), lambda i: (i, 0)),
        compiler_params=_cparams(vmem_limit),
    )(x, wa)


def _weight_specs(d, h):
    return [
        pl.BlockSpec((d, h), lambda i: (0, 0)),              # Wb (self half)
        pl.BlockSpec((1, h), lambda i: (0, 0)),              # hidden bias
        pl.BlockSpec((1, h), lambda i: (0, 0)),              # dist w1
        pl.BlockSpec((1, h), lambda i: (0, 0)),              # dist b1
        pl.BlockSpec((1, h), lambda i: (0, 0)),              # dist w2
        pl.BlockSpec(memory_space=pltpu.MemorySpace.SMEM),   # dist b2 (scalar)
    ]


def _gather_in_specs(n, d, k, h, tm, in_kernel_gather):
    if in_kernel_gather:
        return [pl.BlockSpec((tm, d), lambda i: (i, 0)),      # feat tile
                pl.BlockSpec((n, h), lambda i: (0, 0)),       # full projected a, VMEM-resident
                pl.BlockSpec((tm, k), lambda i: (i, 0)),      # dists_argmax tile
                pl.BlockSpec((tm, k), lambda i: (i, 0))]      # dists_max tile
    return [pl.BlockSpec((tm, d), lambda i: (i, 0)),
            pl.BlockSpec((tm, k, h), lambda i: (i, 0, 0)),    # pre-gathered (fallback)
            pl.BlockSpec((tm, k), lambda i: (i, 0))]
    # TODO(synk): on v5e consider pipeline_mode=pl.Buffered(3) for the (tm,K,H) input.


def _mid_layer(feat, a, dm, idx, p, wa_next, *, tm, vmem_limit, allow_gather):
    n, d = feat.shape
    h = a.shape[1]
    k = dm.shape[1]
    hn = wa_next.shape[1]
    in_kernel_gather = allow_gather and _gather_probe(n, k, h, tm)
    if in_kernel_gather:
        data_args = (feat, a, idx, dm)
    else:
        # Fallback: XLA row gather (clip semantics would silently hide bad dists_argmax).
        ag = jnp.take(a, idx.reshape(-1), axis=0, mode="clip").reshape(n, k, h)
        data_args = (feat, ag, dm)
    in_specs = (_gather_in_specs(n, d, k, h, tm, in_kernel_gather)
                + _weight_specs(d, h)
                + [pl.BlockSpec((h, hn), lambda i: (0, 0))])  # Wa of the NEXT layer (fused)
    kernel = functools.partial(_mid_kernel, inv_k=1.0 / k,
                               in_kernel_gather=in_kernel_gather)
    return pl.pallas_call(
        kernel,
        out_shape=(jax.ShapeDtypeStruct((n, h), jnp.float32),
                   jax.ShapeDtypeStruct((n, hn), jnp.float32)),
        grid=(n // tm,),
        in_specs=in_specs,
        out_specs=(pl.BlockSpec((tm, h), lambda i: (i, 0)),
                   pl.BlockSpec((tm, hn), lambda i: (i, 0))),
        compiler_params=_cparams(vmem_limit),
    )(*data_args, p["wb"], p["bh"], p["dist_w1"], p["dist_b1"],
      p["dist_w2"], p["dist_b2"], wa_next)


def _final_layer(feat, a, dm, idx, p, *, tm, vmem_limit, normalize, allow_gather):
    n, d = feat.shape
    h = a.shape[1]
    k = dm.shape[1]
    in_kernel_gather = allow_gather and _gather_probe(n, k, h, tm)
    if in_kernel_gather:
        data_args = (feat, a, idx, dm)
    else:
        ag = jnp.take(a, idx.reshape(-1), axis=0, mode="clip").reshape(n, k, h)
        data_args = (feat, ag, dm)
    in_specs = (_gather_in_specs(n, d, k, h, tm, in_kernel_gather)
                + _weight_specs(d, h)
                + [pl.BlockSpec((1, h), lambda i: (0, 0)),               # pos weight
                   pl.BlockSpec(memory_space=pltpu.MemorySpace.SMEM)])   # pos bias (scalar)
    kernel = functools.partial(_final_kernel, normalize=normalize,
                               in_kernel_gather=in_kernel_gather)
    # TODO(synk): pad the K lane dim of pos to 128 (unmasked lane-dense stores) and crop.
    return pl.pallas_call(
        kernel,
        out_shape=jax.ShapeDtypeStruct((n, k), jnp.float32),
        grid=(n // tm,),
        in_specs=in_specs,
        out_specs=pl.BlockSpec((tm, k), lambda i: (i, 0)),
        compiler_params=_cparams(vmem_limit),
    )(*data_args, p["wb"], p["bh"], p["dist_w1"], p["dist_b1"],
      p["dist_w2"], p["dist_b2"], p["pos_w"], p["pos_b"])


def pgnn_forward(params, x, dists_max, dists_argmax, *,
                 layer_num=2, feature_pre=True, tm=None):
    x = x.astype(jnp.float32)
    dm = dists_max.astype(jnp.float32)
    idx = dists_argmax.astype(jnp.int32)
    n, k = dm.shape

    first = params["conv_first"]
    hidden_dim = first["wa"].shape[1]
    d_in = params["pre_wt"].shape[1] if feature_pre else x.shape[1]

    vmem_limit = _vmem_limit_bytes()
    # Fast path keeps the whole projected matrix `a` resident in VMEM (double-buffered),
    # so gate on a per-generation capacity check (64 MiB on v7x vs 128 MiB on v5e/v6e).
    n8 = -(-n // 8) * 8
    resident_bytes = 2 * n8 * hidden_dim * 4
    allow_gather = resident_bytes <= vmem_limit // 2

    if tm is None:
        tm = _pick_tm(n, k, hidden_dim, max(d_in, hidden_dim), hidden_dim,
                      vmem_limit, resident_bytes if allow_gather else 0)
    tm = max(8, tm - tm % 8)
    n_pad = -(-n // tm) * tm
    if n_pad != n:   # pad the node axis: full pipelined tiles on every generation
        pad = n_pad - n
        x = jnp.pad(x, ((0, pad), (0, 0)))
        dm = jnp.pad(dm, ((0, pad), (0, 0)))
        idx = jnp.pad(idx, ((0, pad), (0, 0)))

    if feature_pre:
        feat, a = _pre_proj(x, params["pre_wt"], params["pre_b"], first["wa"],
                            tm=tm, vmem_limit=vmem_limit)
    else:
        feat = x
        a = _proj(feat, first["wa"], tm=tm, vmem_limit=vmem_limit)

    layers = [first] + list(params["conv_hidden"]) + (
        [params["conv_out"]] if layer_num > 1 else [])
    # TODO(synk): F.dropout between layers omitted -- eval-mode (identity) semantics.
    for li in range(len(layers) - 1):
        feat, a = _mid_layer(feat, a, dm, idx, layers[li], layers[li + 1]["wa"],
                             tm=tm, vmem_limit=vmem_limit, allow_gather=allow_gather)
    pos = _final_layer(feat, a, dm, idx, layers[-1], tm=tm, vmem_limit=vmem_limit,
                       normalize=(layer_num > 1), allow_gather=allow_gather)
    return pos[:n]


# ----------------------------- parameter init ---------------------------------

def _xavier_uniform(key, shape, gain):
    fan_out, fan_in = shape                  # torch nn.Linear weight layout (out, in)
    bound = gain * (6.0 / (fan_in + fan_out)) ** 0.5
    return jax.random.uniform(key, shape, jnp.float32, -bound, bound)


def _init_pgnn_layer(key, in_dim, out_dim):
    gain = 2.0 ** 0.5                        # nn.init.calculate_gain('relu')
    kk = jax.random.split(key, 4)
    w_hidden = _xavier_uniform(kk[2], (out_dim, 2 * in_dim), gain)       # (H, 2*in)
    return {
        # dist_compute = Nonlinear(1, H, 1), stored as lane-dense rows
        "dist_w1": _xavier_uniform(kk[0], (out_dim, 1), gain)[:, 0][None, :],   # (1, H)
        "dist_b1": jnp.zeros((1, out_dim), jnp.float32),
        "dist_w2": _xavier_uniform(kk[1], (1, out_dim), gain),                  # (1, H)
        "dist_b2": jnp.zeros((1,), jnp.float32),
        # linear_hidden split once at init: messages half / self-feature half
        "wa": w_hidden[:, :in_dim].T,        # (in, H)
        "wb": w_hidden[:, in_dim:].T,        # (in, H)
        "bh": jnp.zeros((1, out_dim), jnp.float32),
        # linear_out_position
        "pos_w": _xavier_uniform(kk[3], (1, out_dim), gain),                    # (1, H)
        "pos_b": jnp.zeros((1,), jnp.float32),
    }


def init_pgnn(key, input_dim, feature_dim, hidden_dim, output_dim,
              layer_num=2, feature_pre=True):
    if layer_num == 1:
        hidden_dim = output_dim
    ks = jax.random.split(key, layer_num + 2)
    first_in = feature_dim if feature_pre else input_dim
    params = {
        "pre_wt": _xavier_uniform(ks[0], (feature_dim, input_dim), 1.0).T,  # (in, feat)
        "pre_b": jnp.zeros((1, feature_dim), jnp.float32),
        "conv_first": _init_pgnn_layer(ks[1], first_in, hidden_dim),
        "conv_hidden": [_init_pgnn_layer(ks[2 + i], hidden_dim, hidden_dim)
                        for i in range(layer_num - 2)],
    }
    if layer_num > 1:
        params["conv_out"] = _init_pgnn_layer(ks[layer_num], hidden_dim, output_dim)
    return params


# ----------------------------- pure-JAX reference ------------------------------

def _ref_layer(feat, dm, idx, p):
    hp = jax.lax.Precision.HIGHEST
    h1 = jnp.maximum(dm[..., None] * p["dist_w1"][0] + p["dist_b1"][0], 0.0)
    d = jnp.sum(h1 * p["dist_w2"][0], axis=-1) + p["dist_b2"][0]          # (N, K)
    subset = feat[idx]                                                    # (N, K, D)
    messages = subset * d[..., None]
    selff = jnp.broadcast_to(feat[:, None, :], subset.shape)
    cat = jnp.concatenate([messages, selff], axis=-1)                     # (N, K, 2D)
    w_hidden = jnp.concatenate([p["wa"], p["wb"]], axis=0)                # (2D, H)
    hidden = jnp.maximum(jnp.matmul(cat, w_hidden, precision=hp) + p["bh"][0], 0.0)
    pos = jnp.sum(hidden * p["pos_w"][0], axis=-1) + p["pos_b"][0]
    struct = jnp.mean(hidden, axis=1)
    return pos, struct


def _ref_forward(params, x, dm, idx, *, layer_num=2, feature_pre=True):
    hp = jax.lax.Precision.HIGHEST
    x = x.astype(jnp.float32)
    if feature_pre:
        x = jnp.matmul(x, params["pre_wt"], precision=hp) + params["pre_b"]
    pos, x = _ref_layer(x, dm, idx, params["conv_first"])
    if layer_num == 1:
        return pos
    for lp in params["conv_hidden"]:
        _, x = _ref_layer(x, dm, idx, lp)
    pos, _ = _ref_layer(x, dm, idx, params["conv_out"])
    nrm = jnp.sqrt(jnp.sum(pos * pos, axis=-1, keepdims=True))
    return pos / jnp.maximum(nrm, 1e-12)


# ----------------------------- demo -------------------------------------------

if __name__ == "__main__":
    key = jax.random.PRNGKey(0)
    N, K = 16, 8                                     # nodes, anchor sets
    input_dim, feature_dim, hidden_dim, output_dim = 32, 16, 16, 8

    kx, kd, ka, kp = jax.random.split(key, 4)
    x = jax.random.normal(kx, (N, input_dim), jnp.float32)            # data.features[...]
    dists_max = jax.random.uniform(kd, (N, K), jnp.float32)           # data.dists_max
    dists_argmax = jax.random.randint(ka, (N, K), 0, N, jnp.int32)    # data.dists_argmax

    params = init_pgnn(kp, input_dim, feature_dim, hidden_dim, output_dim,
                       layer_num=2, feature_pre=True)

    fwd = jax.jit(functools.partial(pgnn_forward, layer_num=2, feature_pre=True))
    out = jax.block_until_ready(fwd(params, x, dists_max, dists_argmax))
    assert out.shape == (N, K) and out.dtype == jnp.float32

    ref = _ref_forward(params, x, dists_max, dists_argmax, layer_num=2, feature_pre=True)
    max_diff = float(jnp.max(jnp.abs(out - ref)))
    assert max_diff < 5e-2, f"mismatch vs pure-JAX reference: {max_diff}"
    print("KERNEL_OK")
</pallas_src>

<mosaic_0001>
module attributes {stable_mosaic.version = 11 : i64} {
  func.func @_pre_proj_kernel(%arg0: i32, %arg1: memref<8x32xf32, #tpu.memory_space<vmem>>, %arg2: memref<32x16xf32, #tpu.memory_space<vmem>>, %arg3: memref<1x16xf32, #tpu.memory_space<vmem>>, %arg4: memref<16x16xf32, #tpu.memory_space<vmem>>, %arg5: memref<8x16xf32, #tpu.memory_space<vmem>>, %arg6: memref<8x16xf32, #tpu.memory_space<vmem>>) attributes {dimension_semantics = [#tpu.dimension_semantics<parallel>], iteration_bounds = array<i64: 2>, scalar_prefetch = 0 : i64, scratch_operands = 0 : i64, tpu.core_type = #tpu.core_type<tc>, window_params = [{transform_indices = @transform_0, window_bounds = array<i64: 8, 32>}, {pipeline_mode = #tpu.pipeline_mode<synchronous>, transform_indices = @transform_1, window_bounds = array<i64: 32, 16>}, {pipeline_mode = #tpu.pipeline_mode<synchronous>, transform_indices = @transform_2, window_bounds = array<i64: 1, 16>}, {pipeline_mode = #tpu.pipeline_mode<synchronous>, transform_indices = @transform_3, window_bounds = array<i64: 16, 16>}, {transform_indices = @transform_4, window_bounds = array<i64: 8, 16>}, {transform_indices = @transform_5, window_bounds = array<i64: 8, 16>}]} {
    %c0 = arith.constant 0 : index
    %c0_0 = arith.constant 0 : index
    %0 = vector.load %arg1[%c0, %c0_0] : memref<8x32xf32, #tpu.memory_space<vmem>>, vector<8x32xf32>
    %c0_1 = arith.constant 0 : index
    %c0_2 = arith.constant 0 : index
    %1 = vector.load %arg2[%c0_1, %c0_2] : memref<32x16xf32, #tpu.memory_space<vmem>>, vector<32x16xf32>
    %cst = arith.constant dense<0.000000e+00> : vector<8x16xf32>
    %2 = tpu.matmul %0, %1, %cst {dimension_numbers = #tpu.dot_dimension_numbers<[1], [0], [0], [1], [0, 0, 1, 1], [], []>} : vector<8x32xf32>, vector<32x16xf32>, vector<8x16xf32> -> vector<8x16xf32>
    %c0_3 = arith.constant 0 : index
    %c0_4 = arith.constant 0 : index
    %3 = vector.load %arg3[%c0_3, %c0_4] : memref<1x16xf32, #tpu.memory_space<vmem>>, vector<1x16xf32>
    %4 = vector.broadcast %3 : vector<1x16xf32> to vector<8x16xf32>
    %5 = arith.addf %2, %4 : vector<8x16xf32>
    %c0_5 = arith.constant 0 : index
    %c0_6 = arith.constant 0 : index
    %6 = vector.load %arg5[%c0_5, %c0_6] : memref<8x16xf32, #tpu.memory_space<vmem>>, vector<8x16xf32>
    tpu.vector_store %arg5[%c0_5, %c0_6], %5 {strides = array<i32>} : memref<8x16xf32, #tpu.memory_space<vmem>>, vector<8x16xf32>,
    %c0_7 = arith.constant 0 : index
    %c0_8 = arith.constant 0 : index
    %7 = vector.load %arg4[%c0_7, %c0_8] : memref<16x16xf32, #tpu.memory_space<vmem>>, vector<16x16xf32>
    %cst_9 = arith.constant dense<0.000000e+00> : vector<8x16xf32>
    %8 = tpu.matmul %5, %7, %cst_9 {dimension_numbers = #tpu.dot_dimension_numbers<[1], [0], [0], [1], [0, 0, 1, 1], [], []>} : vector<8x16xf32>, vector<16x16xf32>, vector<8x16xf32> -> vector<8x16xf32>
    %c0_10 = arith.constant 0 : index
    %c0_11 = arith.constant 0 : index
    %9 = vector.load %arg6[%c0_10, %c0_11] : memref<8x16xf32, #tpu.memory_space<vmem>>, vector<8x16xf32>
    tpu.vector_store %arg6[%c0_10, %c0_11], %8 {strides = array<i32>} : memref<8x16xf32, #tpu.memory_space<vmem>>, vector<8x16xf32>,
    return
  }
  func.func @transform_0(%arg0: i32) -> (i32, i32) {
    %c0_i32 = arith.constant 0 : i32
    %c0_i32_0 = arith.constant 0 : i32
    return %arg0, %c0_i32 : i32, i32
  }
  func.func @transform_1(%arg0: i32) -> (i32, i32) {
    %c0_i32 = arith.constant 0 : i32
    %c0_i32_0 = arith.constant 0 : i32
    %c0_i32_1 = arith.constant 0 : i32
    return %c0_i32, %c0_i32_0 : i32, i32
  }
  func.func @transform_2(%arg0: i32) -> (i32, i32) {
    %c0_i32 = arith.constant 0 : i32
    %c0_i32_0 = arith.constant 0 : i32
    %c0_i32_1 = arith.constant 0 : i32
    return %c0_i32, %c0_i32_0 : i32, i32
  }
  func.func @transform_3(%arg0: i32) -> (i32, i32) {
    %c0_i32 = arith.constant 0 : i32
    %c0_i32_0 = arith.constant 0 : i32
    %c0_i32_1 = arith.constant 0 : i32
    return %c0_i32, %c0_i32_0 : i32, i32
  }
  func.func @transform_4(%arg0: i32) -> (i32, i32) {
    %c0_i32 = arith.constant 0 : i32
    %c0_i32_0 = arith.constant 0 : i32
    return %arg0, %c0_i32 : i32, i32
  }
  func.func @transform_5(%arg0: i32) -> (i32, i32) {
    %c0_i32 = arith.constant 0 : i32
    %c0_i32_0 = arith.constant 0 : i32
    return %arg0, %c0_i32 : i32, i32
  }
}

module attributes {stable_mosaic.version = 11 : i64} {
  func.func @_mid_kernel(%arg0: i32, %arg1: memref<8x16xf32, #tpu.memory_space<vmem>>, %arg2: memref<8x8x16xf32, #tpu.memory_space<vmem>>, %arg3: memref<8x8xf32, #tpu.memory_space<vmem>>, %arg4: memref<16x16xf32, #tpu.memory_space<vmem>>, %arg5: memref<1x16xf32, #tpu.memory_space<vmem>>, %arg6: memref<1x16xf32, #tpu.memory_space<vmem>>, %arg7: memref<1x16xf32, #tpu.memory_space<vmem>>, %arg8: memref<1x16xf32, #tpu.memory_space<vmem>>, %arg9: memref<1xf32, #tpu.memory_space<smem>>, %arg10: memref<16x8xf32, #tpu.memory_space<vmem>>, %arg11: memref<8x16xf32, #tpu.memory_space<vmem>>, %arg12: memref<8x8xf32, #tpu.memory_space<vmem>>) attributes {dimension_semantics = [#tpu.dimension_semantics<parallel>], iteration_bounds = array<i64: 2>, scalar_prefetch = 0 : i64, scratch_operands = 0 : i64, tpu.core_type = #tpu.core_type<tc>, window_params = [{transform_indices = @transform_0, window_bounds = array<i64: 8, 16>}, {transform_indices = @transform_1, window_bounds = array<i64: 8, 8, 16>}, {transform_indices = @transform_2, window_bounds = array<i64: 8, 8>}, {pipeline_mode = #tpu.pipeline_mode<synchronous>, transform_indices = @transform_3, window_bounds = array<i64: 16, 16>}, {pipeline_mode = #tpu.pipeline_mode<synchronous>, transform_indices = @transform_4, window_bounds = array<i64: 1, 16>}, {pipeline_mode = #tpu.pipeline_mode<synchronous>, transform_indices = @transform_5, window_bounds = array<i64: 1, 16>}, {pipeline_mode = #tpu.pipeline_mode<synchronous>, transform_indices = @transform_6, window_bounds = array<i64: 1, 16>}, {pipeline_mode = #tpu.pipeline_mode<synchronous>, transform_indices = @transform_7, window_bounds = array<i64: 1, 16>}, {transform_indices = @transform_8, window_bounds = array<i64: 1>}, {pipeline_mode = #tpu.pipeline_mode<synchronous>, transform_indices = @transform_9, window_bounds = array<i64: 16, 8>}, {transform_indices = @transform_10, window_bounds = array<i64: 8, 16>}, {transform_indices = @transform_11, window_bounds = array<i64: 8, 8>}]} {
    %c0 = arith.constant 0 : index
    %c0_0 = arith.constant 0 : index
    %c0_1 = arith.constant 0 : index
    %0 = vector.load %arg2[%c0, %c0_0, %c0_1] : memref<8x8x16xf32, #tpu.memory_space<vmem>>, vector<8x8x16xf32>
    %c0_2 = arith.constant 0 : index
    %c0_3 = arith.constant 0 : index
    %1 = vector.load %arg1[%c0_2, %c0_3] : memref<8x16xf32, #tpu.memory_space<vmem>>, vector<8x16xf32>
    %c0_4 = arith.constant 0 : index
    %c0_5 = arith.constant 0 : index
    %2 = vector.load %arg3[%c0_4, %c0_5] : memref<8x8xf32, #tpu.memory_space<vmem>>, vector<8x8xf32>
    %c0_6 = arith.constant 0 : index
    %c0_7 = arith.constant 0 : index
    %3 = vector.load %arg4[%c0_6, %c0_7] : memref<16x16xf32, #tpu.memory_space<vmem>>, vector<16x16xf32>
    %c0_8 = arith.constant 0 : index
    %c0_9 = arith.constant 0 : index
    %4 = vector.load %arg5[%c0_8, %c0_9] : memref<1x16xf32, #tpu.memory_space<vmem>>, vector<1x16xf32>
    %c0_10 = arith.constant 0 : index
    %c0_11 = arith.constant 0 : index
    %5 = vector.load %arg6[%c0_10, %c0_11] : memref<1x16xf32, #tpu.memory_space<vmem>>, vector<1x16xf32>
    %c0_12 = arith.constant 0 : index
    %c0_13 = arith.constant 0 : index
    %6 = vector.load %arg7[%c0_12, %c0_13] : memref<1x16xf32, #tpu.memory_space<vmem>>, vector<1x16xf32>
    %c0_14 = arith.constant 0 : index
    %c0_15 = arith.constant 0 : index
    %7 = vector.load %arg8[%c0_14, %c0_15] : memref<1x16xf32, #tpu.memory_space<vmem>>, vector<1x16xf32>
    %c0_16 = arith.constant 0 : index
    %8 = memref.load %arg9[%c0_16] : memref<1xf32, #tpu.memory_space<smem>>
    %9 = vector.shape_cast %2 : vector<8x8xf32> to vector<8x8x1xf32>
    %10 = vector.shape_cast %5 : vector<1x16xf32> to vector<1x1x16xf32>
    %11 = vector.broadcast %9 : vector<8x8x1xf32> to vector<8x8x16xf32>
    %12 = vector.broadcast %10 : vector<1x1x16xf32> to vector<8x8x16xf32>
    %13 = arith.mulf %11, %12 : vector<8x8x16xf32>
    %14 = vector.shape_cast %6 : vector<1x16xf32> to vector<1x1x16xf32>
    %15 = vector.broadcast %14 : vector<1x1x16xf32> to vector<8x8x16xf32>
    %16 = arith.addf %13, %15 : vector<8x8x16xf32>
    %cst = arith.constant 0.000000e+00 : f32
    %17 = vector.broadcast %cst : f32 to vector<8x8x16xf32>
    %18 = arith.maximumf %16, %17 : vector<8x8x16xf32>
    %19 = vector.shape_cast %7 : vector<1x16xf32> to vector<1x1x16xf32>
    %20 = vector.broadcast %19 : vector<1x1x16xf32> to vector<8x8x16xf32>
    %21 = arith.mulf %18, %20 : vector<8x8x16xf32>
    %cst_17 = arith.constant dense<0.000000e+00> : vector<8x8xf32>
    %22 = vector.multi_reduction <add>, %21, %cst_17 [2] : vector<8x8x16xf32> to vector<8x8xf32>
    %23 = vector.shape_cast %22 : vector<8x8xf32> to vector<8x8x1xf32>
    %24 = vector.broadcast %8 : f32 to vector<8x8x1xf32>
    %25 = arith.addf %23, %24 : vector<8x8x1xf32>
    %cst_18 = arith.constant dense<0.000000e+00> : vector<8x16xf32>
    %26 = tpu.matmul %1, %3, %cst_18 {dimension_numbers = #tpu.dot_dimension_numbers<[1], [0], [0], [1], [0, 0, 1, 1], [], []>} : vector<8x16xf32>, vector<16x16xf32>, vector<8x16xf32> -> vector<8x16xf32>
    %27 = vector.broadcast %4 : vector<1x16xf32> to vector<8x16xf32>
    %28 = arith.addf %26, %27 : vector<8x16xf32>
    %29 = vector.broadcast %25 : vector<8x8x1xf32> to vector<8x8x16xf32>
    %30 = arith.mulf %29, %0 : vector<8x8x16xf32>
    %31 = vector.shape_cast %28 : vector<8x16xf32> to vector<8x1x16xf32>
    %32 = vector.broadcast %31 : vector<8x1x16xf32> to vector<8x8x16xf32>
    %33 = arith.addf %30, %32 : vector<8x8x16xf32>
    %cst_19 = arith.constant 0.000000e+00 : f32
    %34 = vector.broadcast %cst_19 : f32 to vector<8x8x16xf32>
    %35 = arith.maximumf %33, %34 : vector<8x8x16xf32>
    %cst_20 = arith.constant dense<0.000000e+00> : vector<8x16xf32>
    %36 = vector.multi_reduction <add>, %35, %cst_20 [1] : vector<8x8x16xf32> to vector<8x16xf32>
    %cst_21 = arith.constant 1.250000e-01 : f32
    %37 = vector.broadcast %cst_21 : f32 to vector<8x16xf32>
    %38 = arith.mulf %36, %37 : vector<8x16xf32>
    %c0_22 = arith.constant 0 : index
    %c0_23 = arith.constant 0 : index
    %39 = vector.load %arg11[%c0_22, %c0_23] : memref<8x16xf32, #tpu.memory_space<vmem>>, vector<8x16xf32>
    tpu.vector_store %arg11[%c0_22, %c0_23], %38 {strides = array<i32>} : memref<8x16xf32, #tpu.memory_space<vmem>>, vector<8x16xf32>,
    %c0_24 = arith.constant 0 : index
    %c0_25 = arith.constant 0 : index
    %40 = vector.load %arg10[%c0_24, %c0_25] : memref<16x8xf32, #tpu.memory_space<vmem>>, vector<16x8xf32>
    %cst_26 = arith.constant dense<0.000000e+00> : vector<8x8xf32>
    %41 = tpu.matmul %38, %40, %cst_26 {dimension_numbers = #tpu.dot_dimension_numbers<[1], [0], [0], [1], [0, 0, 1, 1], [], []>} : vector<8x16xf32>, vector<16x8xf32>, vector<8x8xf32> -> vector<8x8xf32>
    %c0_27 = arith.constant 0 : index
    %c0_28 = arith.constant 0 : index
    %42 = vector.load %arg12[%c0_27, %c0_28] : memref<8x8xf32, #tpu.memory_space<vmem>>, vector<8x8xf32>
    tpu.vector_store %arg12[%c0_27, %c0_28], %41 {strides = array<i32>} : memref<8x8xf32, #tpu.memory_space<vmem>>, vector<8x8xf32>,
    return
  }
  func.func @transform_0(%arg0: i32) -> (i32, i32) {
    %c0_i32 = arith.constant 0 : i32
    %c0_i32_0 = arith.constant 0 : i32
    return %arg0, %c0_i32 : i32, i32
  }
  func.func @transform_1(%arg0: i32) -> (i32, i32, i32) {
    %c0_i32 = arith.constant 0 : i32
    %c0_i32_0 = arith.constant 0 : i32
    %c0_i32_1 = arith.constant 0 : i32
    return %arg0, %c0_i32, %c0_i32_0 : i32, i32, i32
  }
  func.func @transform_2(%arg0: i32) -> (i32, i32) {
    %c0_i32 = arith.constant 0 : i32
    %c0_i32_0 = arith.constant 0 : i32
    return %arg0, %c0_i32 : i32, i32
  }
  func.func @transform_3(%arg0: i32) -> (i32, i32) {
    %c0_i32 = arith.constant 0 : i32
    %c0_i32_0 = arith.constant 0 : i32
    %c0_i32_1 = arith.constant 0 : i32
    return %c0_i32, %c0_i32_0 : i32, i32
  }
  func.func @transform_4(%arg0: i32) -> (i32, i32) {
    %c0_i32 = arith.constant 0 : i32
    %c0_i32_0 = arith.constant 0 : i32
    %c0_i32_1 = arith.constant 0 : i32
    return %c0_i32, %c0_i32_0 : i32, i32
  }
  func.func @transform_5(%arg0: i32) -> (i32, i32) {
    %c0_i32 = arith.constant 0 : i32
    %c0_i32_0 = arith.constant 0 : i32
    %c0_i32_1 = arith.constant 0 : i32
    return %c0_i32, %c0_i32_0 : i32, i32
  }
  func.func @transform_6(%arg0: i32) -> (i32, i32) {
    %c0_i32 = arith.constant 0 : i32
    %c0_i32_0 = arith.constant 0 : i32
    %c0_i32_1 = arith.constant 0 : i32
    return %c0_i32, %c0_i32_0 : i32, i32
  }
  func.func @transform_7(%arg0: i32) -> (i32, i32) {
    %c0_i32 = arith.constant 0 : i32
    %c0_i32_0 = arith.constant 0 : i32
    %c0_i32_1 = arith.constant 0 : i32
    return %c0_i32, %c0_i32_0 : i32, i32
  }
  func.func @transform_8(%arg0: i32) -> i32 {
    %c0_i32 = arith.constant 0 : i32
    %c0_i32_0 = arith.constant 0 : i32
    return %c0_i32 : i32
  }
  func.func @transform_9(%arg0: i32) -> (i32, i32) {
    %c0_i32 = arith.constant 0 : i32
    %c0_i32_0 = arith.constant 0 : i32
    %c0_i32_1 = arith.constant 0 : i32
    return %c0_i32, %c0_i32_0 : i32, i32
  }
  func.func @transform_10(%arg0: i32) -> (i32, i32) {
    %c0_i32 = arith.constant 0 : i32
    %c0_i32_0 = arith.constant 0 : i32
    return %arg0, %c0_i32 : i32, i32
  }
  func.func @transform_11(%arg0: i32) -> (i32, i32) {
    %c0_i32 = arith.constant 0 : i32
    %c0_i32_0 = arith.constant 0 : i32
    return %arg0, %c0_i32 : i32, i32
  }
}

module attributes {stable_mosaic.version = 11 : i64} {
  func.func @_final_kernel(%arg0: i32, %arg1: memref<8x16xf32, #tpu.memory_space<vmem>>, %arg2: memref<8x8x8xf32, #tpu.memory_space<vmem>>, %arg3: memref<8x8xf32, #tpu.memory_space<vmem>>, %arg4: memref<16x8xf32, #tpu.memory_space<vmem>>, %arg5: memref<1x8xf32, #tpu.memory_space<vmem>>, %arg6: memref<1x8xf32, #tpu.memory_space<vmem>>, %arg7: memref<1x8xf32, #tpu.memory_space<vmem>>, %arg8: memref<1x8xf32, #tpu.memory_space<vmem>>, %arg9: memref<1xf32, #tpu.memory_space<smem>>, %arg10: memref<1x8xf32, #tpu.memory_space<vmem>>, %arg11: memref<1xf32, #tpu.memory_space<smem>>, %arg12: memref<8x8xf32, #tpu.memory_space<vmem>>) attributes {dimension_semantics = [#tpu.dimension_semantics<parallel>], iteration_bounds = array<i64: 2>, scalar_prefetch = 0 : i64, scratch_operands = 0 : i64, tpu.core_type = #tpu.core_type<tc>, window_params = [{transform_indices = @transform_0, window_bounds = array<i64: 8, 16>}, {transform_indices = @transform_1, window_bounds = array<i64: 8, 8, 8>}, {transform_indices = @transform_2, window_bounds = array<i64: 8, 8>}, {pipeline_mode = #tpu.pipeline_mode<synchronous>, transform_indices = @transform_3, window_bounds = array<i64: 16, 8>}, {pipeline_mode = #tpu.pipeline_mode<synchronous>, transform_indices = @transform_4, window_bounds = array<i64: 1, 8>}, {pipeline_mode = #tpu.pipeline_mode<synchronous>, transform_indices = @transform_5, window_bounds = array<i64: 1, 8>}, {pipeline_mode = #tpu.pipeline_mode<synchronous>, transform_indices = @transform_6, window_bounds = array<i64: 1, 8>}, {pipeline_mode = #tpu.pipeline_mode<synchronous>, transform_indices = @transform_7, window_bounds = array<i64: 1, 8>}, {transform_indices = @transform_8, window_bounds = array<i64: 1>}, {pipeline_mode = #tpu.pipeline_mode<synchronous>, transform_indices = @transform_9, window_bounds = array<i64: 1, 8>}, {transform_indices = @transform_10, window_bounds = array<i64: 1>}, {transform_indices = @transform_11, window_bounds = array<i64: 8, 8>}]} {
    %c0 = arith.constant 0 : index
    %c0_0 = arith.constant 0 : index
    %c0_1 = arith.constant 0 : index
    %0 = vector.load %arg2[%c0, %c0_0, %c0_1] : memref<8x8x8xf32, #tpu.memory_space<vmem>>, vector<8x8x8xf32>
    %c0_2 = arith.constant 0 : index
    %c0_3 = arith.constant 0 : index
    %1 = vector.load %arg1[%c0_2, %c0_3] : memref<8x16xf32, #tpu.memory_space<vmem>>, vector<8x16xf32>
    %c0_4 = arith.constant 0 : index
    %c0_5 = arith.constant 0 : index
    %2 = vector.load %arg3[%c0_4, %c0_5] : memref<8x8xf32, #tpu.memory_space<vmem>>, vector<8x8xf32>
    %c0_6 = arith.constant 0 : index
    %c0_7 = arith.constant 0 : index
    %3 = vector.load %arg4[%c0_6, %c0_7] : memref<16x8xf32, #tpu.memory_space<vmem>>, vector<16x8xf32>
    %c0_8 = arith.constant 0 : index
    %c0_9 = arith.constant 0 : index
    %4 = vector.load %arg5[%c0_8, %c0_9] : memref<1x8xf32, #tpu.memory_space<vmem>>, vector<1x8xf32>
    %c0_10 = arith.constant 0 : index
    %c0_11 = arith.constant 0 : index
    %5 = vector.load %arg6[%c0_10, %c0_11] : memref<1x8xf32, #tpu.memory_space<vmem>>, vector<1x8xf32>
    %c0_12 = arith.constant 0 : index
    %c0_13 = arith.constant 0 : index
    %6 = vector.load %arg7[%c0_12, %c0_13] : memref<1x8xf32, #tpu.memory_space<vmem>>, vector<1x8xf32>
    %c0_14 = arith.constant 0 : index
    %c0_15 = arith.constant 0 : index
    %7 = vector.load %arg8[%c0_14, %c0_15] : memref<1x8xf32, #tpu.memory_space<vmem>>, vector<1x8xf32>
    %c0_16 = arith.constant 0 : index
    %8 = memref.load %arg9[%c0_16] : memref<1xf32, #tpu.memory_space<smem>>
    %9 = vector.shape_cast %2 : vector<8x8xf32> to vector<8x8x1xf32>
    %10 = vector.shape_cast %5 : vector<1x8xf32> to vector<1x1x8xf32>
    %11 = vector.broadcast %9 : vector<8x8x1xf32> to vector<8x8x8xf32>
    %12 = vector.broadcast %10 : vector<1x1x8xf32> to vector<8x8x8xf32>
    %13 = arith.mulf %11, %12 : vector<8x8x8xf32>
    %14 = vector.shape_cast %6 : vector<1x8xf32> to vector<1x1x8xf32>
    %15 = vector.broadcast %14 : vector<1x1x8xf32> to vector<8x8x8xf32>
    %16 = arith.addf %13, %15 : vector<8x8x8xf32>
    %cst = arith.constant 0.000000e+00 : f32
    %17 = vector.broadcast %cst : f32 to vector<8x8x8xf32>
    %18 = arith.maximumf %16, %17 : vector<8x8x8xf32>
    %19 = vector.shape_cast %7 : vector<1x8xf32> to vector<1x1x8xf32>
    %20 = vector.broadcast %19 : vector<1x1x8xf32> to vector<8x8x8xf32>
    %21 = arith.mulf %18, %20 : vector<8x8x8xf32>
    %cst_17 = arith.constant dense<0.000000e+00> : vector<8x8xf32>
    %22 = vector.multi_reduction <add>, %21, %cst_17 [2] : vector<8x8x8xf32> to vector<8x8xf32>
    %23 = vector.shape_cast %22 : vector<8x8xf32> to vector<8x8x1xf32>
    %24 = vector.broadcast %8 : f32 to vector<8x8x1xf32>
    %25 = arith.addf %23, %24 : vector<8x8x1xf32>
    %cst_18 = arith.constant dense<0.000000e+00> : vector<8x8xf32>
    %26 = tpu.matmul %1, %3, %cst_18 {dimension_numbers = #tpu.dot_dimension_numbers<[1], [0], [0], [1], [0, 0, 1, 1], [], []>} : vector<8x16xf32>, vector<16x8xf32>, vector<8x8xf32> -> vector<8x8xf32>
    %27 = vector.broadcast %4 : vector<1x8xf32> to vector<8x8xf32>
    %28 = arith.addf %26, %27 : vector<8x8xf32>
    %29 = vector.broadcast %25 : vector<8x8x1xf32> to vector<8x8x8xf32>
    %30 = arith.mulf %29, %0 : vector<8x8x8xf32>
    %31 = vector.shape_cast %28 : vector<8x8xf32> to vector<8x1x8xf32>
    %32 = vector.broadcast %31 : vector<8x1x8xf32> to vector<8x8x8xf32>
    %33 = arith.addf %30, %32 : vector<8x8x8xf32>
    %cst_19 = arith.constant 0.000000e+00 : f32
    %34 = vector.broadcast %cst_19 : f32 to vector<8x8x8xf32>
    %35 = arith.maximumf %33, %34 : vector<8x8x8xf32>
    %c0_20 = arith.constant 0 : index
    %c0_21 = arith.constant 0 : index
    %36 = vector.load %arg10[%c0_20, %c0_21] : memref<1x8xf32, #tpu.memory_space<vmem>>, vector<1x8xf32>
    %37 = vector.shape_cast %36 : vector<1x8xf32> to vector<1x1x8xf32>
    %38 = vector.broadcast %37 : vector<1x1x8xf32> to vector<8x8x8xf32>
    %39 = arith.mulf %35, %38 : vector<8x8x8xf32>
    %cst_22 = arith.constant dense<0.000000e+00> : vector<8x8xf32>
    %40 = vector.multi_reduction <add>, %39, %cst_22 [2] : vector<8x8x8xf32> to vector<8x8xf32>
    %c0_23 = arith.constant 0 : index
    %41 = memref.load %arg11[%c0_23] : memref<1xf32, #tpu.memory_space<smem>>
    %42 = vector.broadcast %41 : f32 to vector<8x8xf32>
    %43 = arith.addf %40, %42 : vector<8x8xf32>
    %44 = arith.mulf %43, %43 : vector<8x8xf32>
    %cst_24 = arith.constant dense<0.000000e+00> : vector<8xf32>
    %45 = vector.multi_reduction <add>, %44, %cst_24 [1] : vector<8x8xf32> to vector<8xf32>
    %46 = vector.shape_cast %45 : vector<8xf32> to vector<8x1xf32>
    %47 = math.sqrt %46 : vector<8x1xf32>
    %cst_25 = arith.constant 9.99999996E-13 : f32
    %48 = vector.broadcast %cst_25 : f32 to vector<8x1xf32>
    %49 = arith.maximumf %47, %48 : vector<8x1xf32>
    %50 = vector.broadcast %49 : vector<8x1xf32> to vector<8x8xf32>
    %51 = arith.divf %43, %50 : vector<8x8xf32>
    %c0_26 = arith.constant 0 : index
    %c0_27 = arith.constant 0 : index
    %52 = vector.load %arg12[%c0_26, %c0_27] : memref<8x8xf32, #tpu.memory_space<vmem>>, vector<8x8xf32>
    tpu.vector_store %arg12[%c0_26, %c0_27], %51 {strides = array<i32>} : memref<8x8xf32, #tpu.memory_space<vmem>>, vector<8x8xf32>,
    return
  }
  func.func @transform_0(%arg0: i32) -> (i32, i32) {
    %c0_i32 = arith.constant 0 : i32
    %c0_i32_0 = arith.constant 0 : i32
    return %arg0, %c0_i32 : i32, i32
  }
  func.func @transform_1(%arg0: i32) -> (i32, i32, i32) {
    %c0_i32 = arith.constant 0 : i32
    %c0_i32_0 = arith.constant 0 : i32
    %c0_i32_1 = arith.constant 0 : i32
    return %arg0, %c0_i32, %c0_i32_0 : i32, i32, i32
  }
  func.func @transform_2(%arg0: i32) -> (i32, i32) {
    %c0_i32 = arith.constant 0 : i32
    %c0_i32_0 = arith.constant 0 : i32
    return %arg0, %c0_i32 : i32, i32
  }
  func.func @transform_3(%arg0: i32) -> (i32, i32) {
    %c0_i32 = arith.constant 0 : i32
    %c0_i32_0 = arith.constant 0 : i32
    %c0_i32_1 = arith.constant 0 : i32
    return %c0_i32, %c0_i32_0 : i32, i32
  }
  func.func @transform_4(%arg0: i32) -> (i32, i32) {
    %c0_i32 = arith.constant 0 : i32
    %c0_i32_0 = arith.constant 0 : i32
    %c0_i32_1 = arith.constant 0 : i32
    return %c0_i32, %c0_i32_0 : i32, i32
  }
  func.func @transform_5(%arg0: i32) -> (i32, i32) {
    %c0_i32 = arith.constant 0 : i32
    %c0_i32_0 = arith.constant 0 : i32
    %c0_i32_1 = arith.constant 0 : i32
    return %c0_i32, %c0_i32_0 : i32, i32
  }
  func.func @transform_6(%arg0: i32) -> (i32, i32) {
    %c0_i32 = arith.constant 0 : i32
    %c0_i32_0 = arith.constant 0 : i32
    %c0_i32_1 = arith.constant 0 : i32
    return %c0_i32, %c0_i32_0 : i32, i32
  }
  func.func @transform_7(%arg0: i32) -> (i32, i32) {
    %c0_i32 = arith.constant 0 : i32
    %c0_i32_0 = arith.constant 0 : i32
    %c0_i32_1 = arith.constant 0 : i32
    return %c0_i32, %c0_i32_0 : i32, i32
  }
  func.func @transform_8(%arg0: i32) -> i32 {
    %c0_i32 = arith.constant 0 : i32
    %c0_i32_0 = arith.constant 0 : i32
    return %c0_i32 : i32
  }
  func.func @transform_9(%arg0: i32) -> (i32, i32) {
    %c0_i32 = arith.constant 0 : i32
    %c0_i32_0 = arith.constant 0 : i32
    %c0_i32_1 = arith.constant 0 : i32
    return %c0_i32, %c0_i32_0 : i32, i32
  }
  func.func @transform_10(%arg0: i32) -> i32 {
    %c0_i32 = arith.constant 0 : i32
    %c0_i32_0 = arith.constant 0 : i32
    return %c0_i32 : i32
  }
  func.func @transform_11(%arg0: i32) -> (i32, i32) {
    %c0_i32 = arith.constant 0 : i32
    %c0_i32_0 = arith.constant 0 : i32
    return %arg0, %c0_i32 : i32, i32
  }
}

</mosaic_0001>

<llo_original>
// kernel: pgnn_forward.3
$region0: #{pgnn_forward.3}
  #allocation0 [shape = 'u32[]', space=smem, size = 0x4, offset = 0x4, fixed_abs, tag = 'smem constant byte address 0x4 - core index']
  #allocation1 [shape = 'u32[144,128]{1,0:T(1,128)}', space=vmem, size = 0x12000, scoped, tag = 'internal scratch']
  %s0 = inlined_call_operand.vmem [shape: f32[16,32], index: 0, kind: input, shape index: {}]
  %s1 = inlined_call_operand.vmem [shape: f32[32,16], index: 1, kind: input, shape index: {}]
  %s2 = inlined_call_operand.vmem [shape: f32[1,16], index: 2, kind: input, shape index: {}]
  %s3 = inlined_call_operand.vmem [shape: f32[16,16], index: 3, kind: input, shape index: {}]
  %s4 = inlined_call_operand.vmem [shape: f32[16,16], index: 4, kind: output, shape index: {0}]
  %s5 = inlined_call_operand.vmem [shape: f32[16,16], index: 5, kind: output, shape index: {1}]
  %6 = xla_tuple %s4, %s5
  %s7 = sld [smem:[#allocation0]]
  $region57: #{pgnn_forward.3} parent=0
    _
  %s9 = ssub.s32 1, %s7
  %s10 = scalar_select 0, %s9, %s7
  loop: start=0, step=1, limit=4
  $region2: #{pgnn_forward.3} parent=0 // loop_pre_header
    _
  $region3: #{pgnn_forward.3} parent=0 // loop_header
    %s12 = sphi 0, %s16
    %p13 = scmp.ge.s32.totalorder %s12, 4
    %s22 = sphi 0, %s24
    %s25 = sphi 0, %s22
    %s26 = sphi 0, %s25
    %s42 = sphi 0, %s26
    %s46 = sphi 0, %s46
    %s48 = sphi 0, %s46
    %s49 = sphi 0, %s48
    %s63 = sphi 0, %s49
    %s67 = sphi 0, %s67
    %s69 = sphi 0, %s67
    %s70 = sphi 0, %s69
    %s84 = sphi 0, %s70
    %s88 = sphi 0, %s88
    %s90 = sphi 0, %s88
    %s91 = sphi 0, %s90
    %s105 = sphi 0, %s91
    %s111 = sphi 0, %s113
    %s114 = sphi 0, %s111
    %s115 = sphi 0, %s114
    %s131 = sphi 0, %s115
    %s137 = sphi 0, %s139
    %s140 = sphi 0, %s137
    %s141 = sphi 0, %s140
    %s157 = sphi 0, %s141
  $region4: #{pgnn_forward.3} parent=0 // loop_header_branch
    %15 = sbr.rel (%p13) target = $region8
  $region5: #{pgnn_forward.3} parent=0 // loop_body
    %s17 = ssub.s32 %s12, 1
    %s18 = ssub.s32 %s12, 2
    %s19 = sadd.s32 %s12, 1
    %s20 = ssub.s32 %s12, %s19
    %p21 = scmp.eq.s32.totalorder %s20, 0
    %s23 = sadd.s32 %s22, 1
    %s24 = scalar_select %p21, %s22, %s23
    %p27 = pneg %p21
    %p28 = scmp.eq.s32.totalorder %s12, 1
    %p29 = por %p27, %p28
    %p30 = scmp.ne.s32.totalorder %s22, %s25
    %p31 = scmp.eq.s32.totalorder %s12, 0
    %p32 = por %p30, %p31
    %p33 = scmp.ne.s32.totalorder %s22, %s25
    %p34 = scmp.eq.s32.totalorder %s17, 1
    %p35 = por %p33, %p34
    %p36 = scmp.ne.s32.totalorder %s25, %s26
    %p37 = scmp.eq.s32.totalorder %s17, 0
    %p38 = por %p36, %p37
    %p39 = scmp.ne.s32.totalorder %s25, %s26
    %p40 = scmp.eq.s32.totalorder %s18, 1
    %p41 = por %p39, %p40
    %p43 = scmp.ne.s32.totalorder %s26, %s42
    %p44 = scmp.eq.s32.totalorder %s18, 0
    %p45 = por %p43, %p44
    %s47 = sadd.s32 %s46, 1
    %p50 = scmp.eq.s32.totalorder %s12, 1
    %p51 = scmp.ne.s32.totalorder %s46, %s48
    %p52 = scmp.eq.s32.totalorder %s12, 0
    %p53 = por %p51, %p52
    %p54 = scmp.ne.s32.totalorder %s46, %s48
    %p55 = scmp.eq.s32.totalorder %s17, 1
    %p56 = por %p54, %p55
    %p57 = scmp.ne.s32.totalorder %s48, %s49
    %p58 = scmp.eq.s32.totalorder %s17, 0
    %p59 = por %p57, %p58
    %p60 = scmp.ne.s32.totalorder %s48, %s49
    %p61 = scmp.eq.s32.totalorder %s18, 1
    %p62 = por %p60, %p61
    %p64 = scmp.ne.s32.totalorder %s49, %s63
    %p65 = scmp.eq.s32.totalorder %s18, 0
    %p66 = por %p64, %p65
    %s68 = sadd.s32 %s67, 1
    %p71 = scmp.eq.s32.totalorder %s12, 1
    %p72 = scmp.ne.s32.totalorder %s67, %s69
    %p73 = scmp.eq.s32.totalorder %s12, 0
    %p74 = por %p72, %p73
    %p75 = scmp.ne.s32.totalorder %s67, %s69
    %p76 = scmp.eq.s32.totalorder %s17, 1
    %p77 = por %p75, %p76
    %p78 = scmp.ne.s32.totalorder %s69, %s70
    %p79 = scmp.eq.s32.totalorder %s17, 0
    %p80 = por %p78, %p79
    %p81 = scmp.ne.s32.totalorder %s69, %s70
    %p82 = scmp.eq.s32.totalorder %s18, 1
    %p83 = por %p81, %p82
    %p85 = scmp.ne.s32.totalorder %s70, %s84
    %p86 = scmp.eq.s32.totalorder %s18, 0
    %p87 = por %p85, %p86
    %s89 = sadd.s32 %s88, 1
    %p92 = scmp.eq.s32.totalorder %s12, 1
    %p93 = scmp.ne.s32.totalorder %s88, %s90
    %p94 = scmp.eq.s32.totalorder %s12, 0
    %p95 = por %p93, %p94
    %p96 = scmp.ne.s32.totalorder %s88, %s90
    %p97 = scmp.eq.s32.totalorder %s17, 1
    %p98 = por %p96, %p97
    %p99 = scmp.ne.s32.totalorder %s90, %s91
    %p100 = scmp.eq.s32.totalorder %s17, 0
    %p101 = por %p99, %p100
    %p102 = scmp.ne.s32.totalorder %s90, %s91
    %p103 = scmp.eq.s32.totalorder %s18, 1
    %p104 = por %p102, %p103
    %p106 = scmp.ne.s32.totalorder %s91, %s105
    %p107 = scmp.eq.s32.totalorder %s18, 0
    %p108 = por %p106, %p107
    %s109 = ssub.s32 %s12, %s19
    %p110 = scmp.eq.s32.totalorder %s109, 0
    %s112 = sadd.s32 %s111, 1
    %s113 = scalar_select %p110, %s111, %s112
    %p116 = pneg %p110
    %p117 = scmp.eq.s32.totalorder %s12, 1
    %p118 = por %p116, %p117
    %p119 = scmp.ne.s32.totalorder %s111, %s114
    %p120 = scmp.eq.s32.totalorder %s12, 0
    %p121 = por %p119, %p120
    %p122 = scmp.ne.s32.totalorder %s111, %s114
    %p123 = scmp.eq.s32.totalorder %s17, 1
    %p124 = por %p122, %p123
    %p125 = scmp.ne.s32.totalorder %s114, %s115
    %p126 = scmp.eq.s32.totalorder %s17, 0
    %p127 = por %p125, %p126
    %p128 = scmp.ne.s32.totalorder %s114, %s115
    %p129 = scmp.eq.s32.totalorder %s18, 1
    %p130 = por %p128, %p129
    %p132 = scmp.ne.s32.totalorder %s115, %s131
    %p133 = scmp.eq.s32.totalorder %s18, 0
    %p134 = por %p132, %p133
    %s135 = ssub.s32 %s12, %s19
    %p136 = scmp.eq.s32.totalorder %s135, 0
    %s138 = sadd.s32 %s137, 1
    %s139 = scalar_select %p136, %s137, %s138
    %p142 = pneg %p136
    %p143 = scmp.eq.s32.totalorder %s12, 1
    %p144 = por %p142, %p143
    %p145 = scmp.ne.s32.totalorder %s137, %s140
    %p146 = scmp.eq.s32.totalorder %s12, 0
    %p147 = por %p145, %p146
    %p148 = scmp.ne.s32.totalorder %s137, %s140
    %p149 = scmp.eq.s32.totalorder %s17, 1
    %p150 = por %p148, %p149
    %p151 = scmp.ne.s32.totalorder %s140, %s141
    %p152 = scmp.eq.s32.totalorder %s17, 0
    %p153 = por %p151, %p152
    %p154 = scmp.ne.s32.totalorder %s140, %s141
    %p155 = scmp.eq.s32.totalorder %s18, 1
    %p156 = por %p154, %p155
    %p158 = scmp.ne.s32.totalorder %s141, %s157
    %p159 = scmp.eq.s32.totalorder %s18, 0
    %p160 = por %p158, %p159
    %p161 = scmp.le.s32.totalorder 1, %s12
    %p162 = scmp.lt.s32.totalorder %s12, 3
    %p163 = pnand %p161, %p162
    %p164 = pneg %p163
    // Predicated region
    $region9: #{pgnn_forward.3} parent=5 // pred_check
      _
    $region10: #{pgnn_forward.3} parent=5 // pred_check_branch
      %166 = sbr.rel (%p163) target = $region12
    $region11: #{pgnn_forward.3} parent=5 // pred_region
      %s167 = ssub.s32 %s12, 1
      // Predicated region
      $region13: #{pgnn_forward.3} parent=11 // pred_check
        %p168 = pneg %p59
      $region14: #{pgnn_forward.3} parent=11 // pred_check_branch
        %170 = sbr.rel (%p168) target = $region16
      $region15: #{pgnn_forward.3} parent=11 // pred_region
        _
      $region16: #{pgnn_forward.3} parent=11 // pred_fallthru
        _
      // Predicated region
      $region17: #{pgnn_forward.3} parent=11 // pred_check
        %p171 = pneg %p80
      $region18: #{pgnn_forward.3} parent=11 // pred_check_branch
        %173 = sbr.rel (%p171) target = $region20
      $region19: #{pgnn_forward.3} parent=11 // pred_region
        _
      $region20: #{pgnn_forward.3} parent=11 // pred_fallthru
        _
      // Predicated region
      $region21: #{pgnn_forward.3} parent=11 // pred_check
        %p174 = pneg %p101
      $region22: #{pgnn_forward.3} parent=11 // pred_check_branch
        %176 = sbr.rel (%p174) target = $region24
      $region23: #{pgnn_forward.3} parent=11 // pred_region
        _
      $region24: #{pgnn_forward.3} parent=11 // pred_fallthru
        _
    $region12: #{pgnn_forward.3} parent=5 // pred_fallthru
      _
    %p177 = scmp.lt.s32.totalorder %s12, 2
    // Predicated region
    $region25: #{pgnn_forward.3} parent=5 // pred_check
      %p178 = pneg %p177
    $region26: #{pgnn_forward.3} parent=5 // pred_check_branch
      %180 = sbr.rel (%p178) target = $region28
    $region27: #{pgnn_forward.3} parent=5 // pred_region
      // Predicated region
      $region29: #{pgnn_forward.3} parent=27 // pred_check
        %p181 = pneg %p32
      $region30: #{pgnn_forward.3} parent=27 // pred_check_branch
        %183 = sbr.rel (%p181) target = $region32
      $region31: #{pgnn_forward.3} parent=27 // pred_region
        %p184 = scmp.lt.s32.totalorder %s12, 1
        %s185 = scalar_select %p184, %s12, 1
        %s186 = smul.addr %s185, 8
        %s187 = scalar_lea.vmem %s0, %s186
      $region32: #{pgnn_forward.3} parent=27 // pred_fallthru
        _
    $region28: #{pgnn_forward.3} parent=5 // pred_fallthru
      _
    %p188 = scmp.le.s32.totalorder 1, %s12
    %p189 = scmp.lt.s32.totalorder %s12, 3
    %p190 = pnand %p188, %p189
    %p191 = pneg %p190
    // Predicated region
    $region33: #{pgnn_forward.3} parent=5 // pred_check
      _
    $region34: #{pgnn_forward.3} parent=5 // pred_check_branch
      %193 = sbr.rel (%p190) target = $region36
    $region35: #{pgnn_forward.3} parent=5 // pred_region
      %s194 = ssub.s32 %s12, 1
      %p195 = scmp.lt.s32.totalorder %s17, 1
      %s196 = scalar_select %p195, %s17, 1
      %s197 = smul.addr %s196, 8
      %s198 = scalar_lea.vmem %s0, %s197
      %p199 = pneg %p38
      %p200 = pneg %p35
      %p201 = pneg %p59
      %p202 = pneg %p56
      %p203 = pneg %p80
      %p204 = pneg %p77
      %p205 = pneg %p101
      %p206 = pneg %p98
      %p207 = pneg %p127
      %p208 = pneg %p124
      %p209 = scmp.lt.s32.totalorder %s17, 1
      %s210 = scalar_select %p209, %s17, 1
      %s211 = smul.addr %s210, 8
      %s212 = scalar_lea.vmem %s4, %s211
      %p213 = pneg %p153
      %p214 = pneg %p150
      %p215 = scmp.lt.s32.totalorder %s17, 1
      %s216 = scalar_select %p215, %s17, 1
      %s217 = smul.addr %s216, 8
      %s218 = scalar_lea.vmem %s5, %s217
      %p219 = scmp.lt.s32.totalorder %s17, 1
      %s220 = scalar_select %p219, %s17, 1
      %s221 = smul.addr %s220, 8
      %s222 = scalar_lea.vmem %s0, %s221
      %p223 = scmp.lt.s32.totalorder %s17, 1
      %s224 = scalar_select %p223, %s17, 1
      %s225 = smul.addr %s224, 8
      %s226 = scalar_lea.vmem %s4, %s225
      %p227 = scmp.lt.s32.totalorder %s17, 1
      %s228 = scalar_select %p227, %s17, 1
      %s229 = smul.addr %s228, 8
      %s230 = scalar_lea.vmem %s5, %s229
      %v231 = vld [vmem:[%s222] sm:$0xff]
      %v232 = vld [vmem:[%s1] sm:$0xff]
      %v233 = vld [vmem:[%s1 + $0x8] sm:$0xff]
      %v234 = vld [vmem:[%s1 + $0x10] sm:$0xff]
      %v235 = vld [vmem:[%s1 + $0x18] sm:$0xff]
      %v236 = vld [vmem:[%s2] sm:$0x1]
      %v238 = vlaneseq
      %v239 = vshrl.u32 %v238, 7
      %v240 = vsub.s32 0, %v239
      %v241 = vrot.slane %v236, %v240
      %vm243 = vcmask 261120
      %v245 = vsel %vm243, %v231, 0
      %247 = vmatprep.subr.mxu0 0.0
      %248 = vmatpush1.msra.mxu0 0.0
      %249 = vmatprep.subr.mxu0 0.0
      %250 = vmatpush1.msra.mxu0 0.0
      %251 = vmatprep.subr.mxu0 0.0
      %252 = vmatpush1.msra.mxu0 0.0
      %253 = vmatprep.subr.mxu0 0.0
      %254 = vmatpush1.msra.mxu0 0.0
      %255 = vmatprep.subr.mxu0 0.0
      %256 = vmatpush1.msra.mxu0 0.0
      %257 = vmatprep.subr.mxu0 0.0
      %258 = vmatpush1.msra.mxu0 0.0
      %259 = vmatprep.subr.mxu0 0.0
      %260 = vmatpush1.msra.mxu0 0.0
      %261 = vmatprep.subr.mxu0 0.0
      %262 = vmatpush1.msra.mxu0 0.0
      %263 = vmatprep.subr.mxu0 0.0
      %264 = vmatpush1.msra.mxu0 0.0
      %265 = vmatprep.subr.mxu0 0.0
      %266 = vmatpush1.msra.mxu0 0.0
      %267 = vmatprep.subr.mxu0 0.0
      %268 = vmatpush1.msra.mxu0 0.0
      %269 = vmatprep.subr.mxu0 0.0
      %270 = vmatpush1.msra.mxu0 0.0
      %271 = vmatprep.subr.mxu0 0.0
      %272 = vmatpush1.msra.mxu0 %v235
      %273 = vmatprep.subr.mxu0 0.0
      %274 = vmatpush1.msra.mxu0 %v234
      %275 = vmatprep.subr.mxu0 0.0
      %276 = vmatpush1.msra.mxu0 %v233
      %277 = vmatprep.subr.mxu0 0.0
      %278 = vmatpush1.msra.mxu0 %v232
      %279 = vmatprep.subr.mxu0 0.0
      %280 = vmatpush2.msra.mxu0 0.0
      %281 = vmatprep.subr.mxu0 0.0
      %282 = vmatpush2.msra.mxu0 0.0
      %283 = vmatprep.subr.mxu0 0.0
      %284 = vmatpush2.msra.mxu0 0.0
      %285 = vmatprep.subr.mxu0 0.0
      %286 = vmatpush2.msra.mxu0 0.0
      %287 = vmatprep.subr.mxu0 0.0
      %288 = vmatpush2.msra.mxu0 0.0
      %289 = vmatprep.subr.mxu0 0.0
      %290 = vmatpush2.msra.mxu0 0.0
      %291 = vmatprep.subr.mxu0 0.0
      %292 = vmatpush2.msra.mxu0 0.0
      %293 = vmatprep.subr.mxu0 0.0
      %294 = vmatpush2.msra.mxu0 0.0
      %295 = vmatprep.subr.mxu0 0.0
      %296 = vmatpush2.msra.mxu0 0.0
      %297 = vmatprep.subr.mxu0 0.0
      %298 = vmatpush2.msra.mxu0 0.0
      %299 = vmatprep.subr.mxu0 0.0
      %300 = vmatpush2.msra.mxu0 0.0
      %301 = vmatprep.subr.mxu0 0.0
      %302 = vmatpush2.msra.mxu0 0.0
      %303 = vmatprep.subr.mxu0 0.0
      %304 = vmatpush2.msra.mxu0 0.0
      %305 = vmatprep.subr.mxu0 0.0
      %306 = vmatpush2.msra.mxu0 0.0
      %307 = vmatprep.subr.mxu0 0.0
      %308 = vmatpush2.msra.mxu0 0.0
      %309 = vmatprep.subr.mxu0 0.0
      %310 = vmatpush2.msra.mxu0 0.0
      %311 = vmatprep.mubr.f32.mxu0 0.0
      %312 = vmatmul.mubr.f32.gmra.mxu0 %v245
      %v313 = vpop.f32.mrf.mxu0
      %v314 = vadd.f32 %v241, %v313
      %v315 = vpop.f32.mrf.mxu0
      %316 = vdwg.mxu0
      %vm317 = vcmask 130048
      %318 = vst.msk [vmem:[%s226] sm:$0xff] %vm317, %v314
      %v319 = vld [vmem:[%s3] sm:$0xff]
      %v320 = vld [vmem:[%s3 + $0x8] sm:$0xff]
      %v322 = vsel %vm317, %v314, 0
      %324 = vmatprep.subr.mxu0 0.0
      %325 = vmatpush1.msra.mxu0 0.0
      %326 = vmatprep.subr.mxu0 0.0
      %327 = vmatpush1.msra.mxu0 0.0
      %328 = vmatprep.subr.mxu0 0.0
      %329 = vmatpush1.msra.mxu0 0.0
      %330 = vmatprep.subr.mxu0 0.0
      %331 = vmatpush1.msra.mxu0 0.0
      %332 = vmatprep.subr.mxu0 0.0
      %333 = vmatpush1.msra.mxu0 0.0
      %334 = vmatprep.subr.mxu0 0.0
      %335 = vmatpush1.msra.mxu0 0.0
      %336 = vmatprep.subr.mxu0 0.0
      %337 = vmatpush1.msra.mxu0 0.0
      %338 = vmatprep.subr.mxu0 0.0
      %339 = vmatpush1.msra.mxu0 0.0
      %340 = vmatprep.subr.mxu0 0.0
      %341 = vmatpush1.msra.mxu0 0.0
      %342 = vmatprep.subr.mxu0 0.0
      %343 = vmatpush1.msra.mxu0 0.0
      %344 = vmatprep.subr.mxu0 0.0
      %345 = vmatpush1.msra.mxu0 0.0
      %346 = vmatprep.subr.mxu0 0.0
      %347 = vmatpush1.msra.mxu0 0.0
      %348 = vmatprep.subr.mxu0 0.0
      %349 = vmatpush1.msra.mxu0 0.0
      %350 = vmatprep.subr.mxu0 0.0
      %351 = vmatpush1.msra.mxu0 0.0
      %352 = vmatprep.subr.mxu0 0.0
      %353 = vmatpush1.msra.mxu0 %v320
      %354 = vmatprep.subr.mxu0 0.0
      %355 = vmatpush1.msra.mxu0 %v319
      %356 = vmatprep.subr.mxu0 0.0
      %357 = vmatpush2.msra.mxu0 0.0
      %358 = vmatprep.subr.mxu0 0.0
      %359 = vmatpush2.msra.mxu0 0.0
      %360 = vmatprep.subr.mxu0 0.0
      %361 = vmatpush2.msra.mxu0 0.0
      %362 = vmatprep.subr.mxu0 0.0
      %363 = vmatpush2.msra.mxu0 0.0
      %364 = vmatprep.subr.mxu0 0.0
      %365 = vmatpush2.msra.mxu0 0.0
      %366 = vmatprep.subr.mxu0 0.0
      %367 = vmatpush2.msra.mxu0 0.0
      %368 = vmatprep.subr.mxu0 0.0
      %369 = vmatpush2.msra.mxu0 0.0
      %370 = vmatprep.subr.mxu0 0.0
      %371 = vmatpush2.msra.mxu0 0.0
      %372 = vmatprep.subr.mxu0 0.0
      %373 = vmatpush2.msra.mxu0 0.0
      %374 = vmatprep.subr.mxu0 0.0
      %375 = vmatpush2.msra.mxu0 0.0
      %376 = vmatprep.subr.mxu0 0.0
      %377 = vmatpush2.msra.mxu0 0.0
      %378 = vmatprep.subr.mxu0 0.0
      %379 = vmatpush2.msra.mxu0 0.0
      %380 = vmatprep.subr.mxu0 0.0
      %381 = vmatpush2.msra.mxu0 0.0
      %382 = vmatprep.subr.mxu0 0.0
      %383 = vmatpush2.msra.mxu0 0.0
      %384 = vmatprep.subr.mxu0 0.0
      %385 = vmatpush2.msra.mxu0 0.0
      %386 = vmatprep.subr.mxu0 0.0
      %387 = vmatpush2.msra.mxu0 0.0
      %388 = vmatprep.mubr.f32.mxu0 0.0
      %389 = vmatmul.mubr.f32.gmra.mxu0 %v322
      %v390 = vpop.f32.mrf.mxu0
      %v391 = vadd.f32 0.0, %v390
      %v392 = vpop.f32.mrf.mxu0
      %393 = vdwg.mxu0
      %394 = vst.msk [vmem:[%s230] sm:$0xff] %vm317, %v391
      %p395 = scmp.lt.s32.totalorder %s17, 1
      %s396 = scalar_select %p395, %s17, 1
      %s397 = smul.addr %s396, 8
      %s398 = scalar_lea.vmem %s4, %s397
      %p399 = scmp.lt.s32.totalorder %s17, 1
      %s400 = scalar_select %p399, %s17, 1
      %s401 = smul.addr %s400, 8
      %s402 = scalar_lea.vmem %s5, %s401
      // Predicated region
      $region37: #{pgnn_forward.3} parent=35 // pred_check
        %p403 = pneg %p124
      $region38: #{pgnn_forward.3} parent=35 // pred_check_branch
        %405 = sbr.rel (%p403) target = $region40
      $region39: #{pgnn_forward.3} parent=35 // pred_region
        _
      $region40: #{pgnn_forward.3} parent=35 // pred_fallthru
        _
      // Predicated region
      $region41: #{pgnn_forward.3} parent=35 // pred_check
        %p406 = pneg %p150
      $region42: #{pgnn_forward.3} parent=35 // pred_check_branch
        %408 = sbr.rel (%p406) target = $region44
      $region43: #{pgnn_forward.3} parent=35 // pred_region
        _
      $region44: #{pgnn_forward.3} parent=35 // pred_fallthru
        _
    $region36: #{pgnn_forward.3} parent=5 // pred_fallthru
      _
    %p409 = scmp.le.s32.totalorder 2, %s12
    // Predicated region
    $region45: #{pgnn_forward.3} parent=5 // pred_check
      %p410 = pneg %p409
    $region46: #{pgnn_forward.3} parent=5 // pred_check_branch
      %412 = sbr.rel (%p410) target = $region48
    $region47: #{pgnn_forward.3} parent=5 // pred_region
      %s413 = ssub.s32 %s12, 2
      // Predicated region
      $region49: #{pgnn_forward.3} parent=47 // pred_check
        %p414 = pneg %p130
      $region50: #{pgnn_forward.3} parent=47 // pred_check_branch
        %416 = sbr.rel (%p414) target = $region52
      $region51: #{pgnn_forward.3} parent=47 // pred_region
        %p417 = scmp.lt.s32.totalorder %s18, 1
        %s418 = scalar_select %p417, %s18, 1
        %s419 = smul.addr %s418, 8
        %s420 = scalar_lea.vmem %s4, %s419
      $region52: #{pgnn_forward.3} parent=47 // pred_fallthru
        _
      // Predicated region
      $region53: #{pgnn_forward.3} parent=47 // pred_check
        %p421 = pneg %p156
      $region54: #{pgnn_forward.3} parent=47 // pred_check_branch
        %423 = sbr.rel (%p421) target = $region56
      $region55: #{pgnn_forward.3} parent=47 // pred_region
        %p424 = scmp.lt.s32.totalorder %s18, 1
        %s425 = scalar_select %p424, %s18, 1
        %s426 = smul.addr %s425, 8
        %s427 = scalar_lea.vmem %s5, %s426
      $region56: #{pgnn_forward.3} parent=47 // pred_fallthru
        _
    $region48: #{pgnn_forward.3} parent=5 // pred_fallthru
      _
  $region6: #{pgnn_forward.3} parent=0 // loop_footer
    %s16 = sadd.s32 1, %s12
  $region7: #{pgnn_forward.3} parent=0 // loop_footer_branch
    %11 = sbr.rel target = $region3
  $region8: #{pgnn_forward.3} parent=0 // loop_exit
    _

// kernel: pgnn_forward.4
$region0: #{pgnn_forward.4}
  #allocation0 [shape = 'u32[]', space=smem, size = 0x4, offset = 0x4, fixed_abs, tag = 'smem constant byte address 0x4 - core index']
  #allocation1 [shape = 'u32[144,128]{1,0:T(1,128)}', space=vmem, size = 0x12000, scoped, tag = 'internal scratch']
  #allocation2 [shape = 'f32[1]{0:T(128)S(6)}', space=smem, size = 0x200, scoped, tag = 'scoped memory for pgnn_forward.4']
  %s0 = inlined_call_operand.vmem [shape: f32[16,16], index: 0, kind: input, shape index: {}]
  %s1 = inlined_call_operand.vmem [shape: f32[16,8,16], index: 1, kind: input, shape index: {}]
  %s2 = inlined_call_operand.vmem [shape: f32[16,8], index: 2, kind: input, shape index: {}]
  %s3 = inlined_call_operand.vmem [shape: f32[16,16], index: 3, kind: input, shape index: {}]
  %s4 = inlined_call_operand.vmem [shape: f32[1,16], index: 4, kind: input, shape index: {}]
  %s5 = inlined_call_operand.vmem [shape: f32[1,16], index: 5, kind: input, shape index: {}]
  %s6 = inlined_call_operand.vmem [shape: f32[1,16], index: 6, kind: input, shape index: {}]
  %s7 = inlined_call_operand.vmem [shape: f32[1,16], index: 7, kind: input, shape index: {}]
  %s8 = inlined_call_operand.<no memory space> [shape: f32[1], index: 8, kind: input, shape index: {}]
  %s9 = inlined_call_operand.vmem [shape: f32[16,8], index: 9, kind: input, shape index: {}]
  %s10 = inlined_call_operand.vmem [shape: f32[16,16], index: 10, kind: output, shape index: {0}]
  %s11 = inlined_call_operand.vmem [shape: f32[16,8], index: 11, kind: output, shape index: {1}]
  %12 = xla_tuple %s10, %s11
  %s13 = sld [smem:[#allocation0]]
  $region81: #{pgnn_forward.4} parent=0
    _
  %s15 = ssub.s32 1, %s13
  %s16 = scalar_select 0, %s15, %s13
  %17 = sst [smem:[#allocation2]] %s8
  loop: start=0, step=1, limit=4
  $region2: #{pgnn_forward.4} parent=0 // loop_pre_header
    _
  $region3: #{pgnn_forward.4} parent=0 // loop_header
    %s19 = sphi 0, %s23
    %p20 = scmp.ge.s32.totalorder %s19, 4
    %s29 = sphi 0, %s31
    %s32 = sphi 0, %s29
    %s33 = sphi 0, %s32
    %s49 = sphi 0, %s33
    %s55 = sphi 0, %s57
    %s58 = sphi 0, %s55
    %s59 = sphi 0, %s58
    %s75 = sphi 0, %s59
    %s81 = sphi 0, %s83
    %s84 = sphi 0, %s81
    %s85 = sphi 0, %s84
    %s101 = sphi 0, %s85
    %s105 = sphi 0, %s105
    %s107 = sphi 0, %s105
    %s108 = sphi 0, %s107
    %s122 = sphi 0, %s108
    %s126 = sphi 0, %s126
    %s128 = sphi 0, %s126
    %s129 = sphi 0, %s128
    %s143 = sphi 0, %s129
    %s147 = sphi 0, %s147
    %s149 = sphi 0, %s147
    %s150 = sphi 0, %s149
    %s164 = sphi 0, %s150
    %s168 = sphi 0, %s168
    %s170 = sphi 0, %s168
    %s171 = sphi 0, %s170
    %s185 = sphi 0, %s171
    %s189 = sphi 0, %s189
    %s191 = sphi 0, %s189
    %s192 = sphi 0, %s191
    %s206 = sphi 0, %s192
    %s210 = sphi 0, %s210
    %s212 = sphi 0, %s210
    %s213 = sphi 0, %s212
    %s227 = sphi 0, %s213
    %s231 = sphi 0, %s231
    %s233 = sphi 0, %s231
    %s234 = sphi 0, %s233
    %s248 = sphi 0, %s234
    %s254 = sphi 0, %s256
    %s257 = sphi 0, %s254
    %s258 = sphi 0, %s257
    %s274 = sphi 0, %s258
    %s280 = sphi 0, %s282
    %s283 = sphi 0, %s280
    %s284 = sphi 0, %s283
    %s300 = sphi 0, %s284
  $region4: #{pgnn_forward.4} parent=0 // loop_header_branch
    %22 = sbr.rel (%p20) target = $region8
  $region5: #{pgnn_forward.4} parent=0 // loop_body
    %s24 = ssub.s32 %s19, 1
    %s25 = ssub.s32 %s19, 2
    %s26 = sadd.s32 %s19, 1
    %s27 = ssub.s32 %s19, %s26
    %p28 = scmp.eq.s32.totalorder %s27, 0
    %s30 = sadd.s32 %s29, 1
    %s31 = scalar_select %p28, %s29, %s30
    %p34 = pneg %p28
    %p35 = scmp.eq.s32.totalorder %s19, 1
    %p36 = por %p34, %p35
    %p37 = scmp.ne.s32.totalorder %s29, %s32
    %p38 = scmp.eq.s32.totalorder %s19, 0
    %p39 = por %p37, %p38
    %p40 = scmp.ne.s32.totalorder %s29, %s32
    %p41 = scmp.eq.s32.totalorder %s24, 1
    %p42 = por %p40, %p41
    %p43 = scmp.ne.s32.totalorder %s32, %s33
    %p44 = scmp.eq.s32.totalorder %s24, 0
    %p45 = por %p43, %p44
    %p46 = scmp.ne.s32.totalorder %s32, %s33
    %p47 = scmp.eq.s32.totalorder %s25, 1
    %p48 = por %p46, %p47
    %p50 = scmp.ne.s32.totalorder %s33, %s49
    %p51 = scmp.eq.s32.totalorder %s25, 0
    %p52 = por %p50, %p51
    %s53 = ssub.s32 %s19, %s26
    %p54 = scmp.eq.s32.totalorder %s53, 0
    %s56 = sadd.s32 %s55, 1
    %s57 = scalar_select %p54, %s55, %s56
    %p60 = pneg %p54
    %p61 = scmp.eq.s32.totalorder %s19, 1
    %p62 = por %p60, %p61
    %p63 = scmp.ne.s32.totalorder %s55, %s58
    %p64 = scmp.eq.s32.totalorder %s19, 0
    %p65 = por %p63, %p64
    %p66 = scmp.ne.s32.totalorder %s55, %s58
    %p67 = scmp.eq.s32.totalorder %s24, 1
    %p68 = por %p66, %p67
    %p69 = scmp.ne.s32.totalorder %s58, %s59
    %p70 = scmp.eq.s32.totalorder %s24, 0
    %p71 = por %p69, %p70
    %p72 = scmp.ne.s32.totalorder %s58, %s59
    %p73 = scmp.eq.s32.totalorder %s25, 1
    %p74 = por %p72, %p73
    %p76 = scmp.ne.s32.totalorder %s59, %s75
    %p77 = scmp.eq.s32.totalorder %s25, 0
    %p78 = por %p76, %p77
    %s79 = ssub.s32 %s19, %s26
    %p80 = scmp.eq.s32.totalorder %s79, 0
    %s82 = sadd.s32 %s81, 1
    %s83 = scalar_select %p80, %s81, %s82
    %p86 = pneg %p80
    %p87 = scmp.eq.s32.totalorder %s19, 1
    %p88 = por %p86, %p87
    %p89 = scmp.ne.s32.totalorder %s81, %s84
    %p90 = scmp.eq.s32.totalorder %s19, 0
    %p91 = por %p89, %p90
    %p92 = scmp.ne.s32.totalorder %s81, %s84
    %p93 = scmp.eq.s32.totalorder %s24, 1
    %p94 = por %p92, %p93
    %p95 = scmp.ne.s32.totalorder %s84, %s85
    %p96 = scmp.eq.s32.totalorder %s24, 0
    %p97 = por %p95, %p96
    %p98 = scmp.ne.s32.totalorder %s84, %s85
    %p99 = scmp.eq.s32.totalorder %s25, 1
    %p100 = por %p98, %p99
    %p102 = scmp.ne.s32.totalorder %s85, %s101
    %p103 = scmp.eq.s32.totalorder %s25, 0
    %p104 = por %p102, %p103
    %s106 = sadd.s32 %s105, 1
    %p109 = scmp.eq.s32.totalorder %s19, 1
    %p110 = scmp.ne.s32.totalorder %s105, %s107
    %p111 = scmp.eq.s32.totalorder %s19, 0
    %p112 = por %p110, %p111
    %p113 = scmp.ne.s32.totalorder %s105, %s107
    %p114 = scmp.eq.s32.totalorder %s24, 1
    %p115 = por %p113, %p114
    %p116 = scmp.ne.s32.totalorder %s107, %s108
    %p117 = scmp.eq.s32.totalorder %s24, 0
    %p118 = por %p116, %p117
    %p119 = scmp.ne.s32.totalorder %s107, %s108
    %p120 = scmp.eq.s32.totalorder %s25, 1
    %p121 = por %p119, %p120
    %p123 = scmp.ne.s32.totalorder %s108, %s122
    %p124 = scmp.eq.s32.totalorder %s25, 0
    %p125 = por %p123, %p124
    %s127 = sadd.s32 %s126, 1
    %p130 = scmp.eq.s32.totalorder %s19, 1
    %p131 = scmp.ne.s32.totalorder %s126, %s128
    %p132 = scmp.eq.s32.totalorder %s19, 0
    %p133 = por %p131, %p132
    %p134 = scmp.ne.s32.totalorder %s126, %s128
    %p135 = scmp.eq.s32.totalorder %s24, 1
    %p136 = por %p134, %p135
    %p137 = scmp.ne.s32.totalorder %s128, %s129
    %p138 = scmp.eq.s32.totalorder %s24, 0
    %p139 = por %p137, %p138
    %p140 = scmp.ne.s32.totalorder %s128, %s129
    %p141 = scmp.eq.s32.totalorder %s25, 1
    %p142 = por %p140, %p141
    %p144 = scmp.ne.s32.totalorder %s129, %s143
    %p145 = scmp.eq.s32.totalorder %s25, 0
    %p146 = por %p144, %p145
    %s148 = sadd.s32 %s147, 1
    %p151 = scmp.eq.s32.totalorder %s19, 1
    %p152 = scmp.ne.s32.totalorder %s147, %s149
    %p153 = scmp.eq.s32.totalorder %s19, 0
    %p154 = por %p152, %p153
    %p155 = scmp.ne.s32.totalorder %s147, %s149
    %p156 = scmp.eq.s32.totalorder %s24, 1
    %p157 = por %p155, %p156
    %p158 = scmp.ne.s32.totalorder %s149, %s150
    %p159 = scmp.eq.s32.totalorder %s24, 0
    %p160 = por %p158, %p159
    %p161 = scmp.ne.s32.totalorder %s149, %s150
    %p162 = scmp.eq.s32.totalorder %s25, 1
    %p163 = por %p161, %p162
    %p165 = scmp.ne.s32.totalorder %s150, %s164
    %p166 = scmp.eq.s32.totalorder %s25, 0
    %p167 = por %p165, %p166
    %s169 = sadd.s32 %s168, 1
    %p172 = scmp.eq.s32.totalorder %s19, 1
    %p173 = scmp.ne.s32.totalorder %s168, %s170
    %p174 = scmp.eq.s32.totalorder %s19, 0
    %p175 = por %p173, %p174
    %p176 = scmp.ne.s32.totalorder %s168, %s170
    %p177 = scmp.eq.s32.totalorder %s24, 1
    %p178 = por %p176, %p177
    %p179 = scmp.ne.s32.totalorder %s170, %s171
    %p180 = scmp.eq.s32.totalorder %s24, 0
    %p181 = por %p179, %p180
    %p182 = scmp.ne.s32.totalorder %s170, %s171
    %p183 = scmp.eq.s32.totalorder %s25, 1
    %p184 = por %p182, %p183
    %p186 = scmp.ne.s32.totalorder %s171, %s185
    %p187 = scmp.eq.s32.totalorder %s25, 0
    %p188 = por %p186, %p187
    %s190 = sadd.s32 %s189, 1
    %p193 = scmp.eq.s32.totalorder %s19, 1
    %p194 = scmp.ne.s32.totalorder %s189, %s191
    %p195 = scmp.eq.s32.totalorder %s19, 0
    %p196 = por %p194, %p195
    %p197 = scmp.ne.s32.totalorder %s189, %s191
    %p198 = scmp.eq.s32.totalorder %s24, 1
    %p199 = por %p197, %p198
    %p200 = scmp.ne.s32.totalorder %s191, %s192
    %p201 = scmp.eq.s32.totalorder %s24, 0
    %p202 = por %p200, %p201
    %p203 = scmp.ne.s32.totalorder %s191, %s192
    %p204 = scmp.eq.s32.totalorder %s25, 1
    %p205 = por %p203, %p204
    %p207 = scmp.ne.s32.totalorder %s192, %s206
    %p208 = scmp.eq.s32.totalorder %s25, 0
    %p209 = por %p207, %p208
    %s211 = sadd.s32 %s210, 1
    %p214 = scmp.eq.s32.totalorder %s19, 1
    %p215 = scmp.ne.s32.totalorder %s210, %s212
    %p216 = scmp.eq.s32.totalorder %s19, 0
    %p217 = por %p215, %p216
    %p218 = scmp.ne.s32.totalorder %s210, %s212
    %p219 = scmp.eq.s32.totalorder %s24, 1
    %p220 = por %p218, %p219
    %p221 = scmp.ne.s32.totalorder %s212, %s213
    %p222 = scmp.eq.s32.totalorder %s24, 0
    %p223 = por %p221, %p222
    %p224 = scmp.ne.s32.totalorder %s212, %s213
    %p225 = scmp.eq.s32.totalorder %s25, 1
    %p226 = por %p224, %p225
    %p228 = scmp.ne.s32.totalorder %s213, %s227
    %p229 = scmp.eq.s32.totalorder %s25, 0
    %p230 = por %p228, %p229
    %s232 = sadd.s32 %s231, 1
    %p235 = scmp.eq.s32.totalorder %s19, 1
    %p236 = scmp.ne.s32.totalorder %s231, %s233
    %p237 = scmp.eq.s32.totalorder %s19, 0
    %p238 = por %p236, %p237
    %p239 = scmp.ne.s32.totalorder %s231, %s233
    %p240 = scmp.eq.s32.totalorder %s24, 1
    %p241 = por %p239, %p240
    %p242 = scmp.ne.s32.totalorder %s233, %s234
    %p243 = scmp.eq.s32.totalorder %s24, 0
    %p244 = por %p242, %p243
    %p245 = scmp.ne.s32.totalorder %s233, %s234
    %p246 = scmp.eq.s32.totalorder %s25, 1
    %p247 = por %p245, %p246
    %p249 = scmp.ne.s32.totalorder %s234, %s248
    %p250 = scmp.eq.s32.totalorder %s25, 0
    %p251 = por %p249, %p250
    %s252 = ssub.s32 %s19, %s26
    %p253 = scmp.eq.s32.totalorder %s252, 0
    %s255 = sadd.s32 %s254, 1
    %s256 = scalar_select %p253, %s254, %s255
    %p259 = pneg %p253
    %p260 = scmp.eq.s32.totalorder %s19, 1
    %p261 = por %p259, %p260
    %p262 = scmp.ne.s32.totalorder %s254, %s257
    %p263 = scmp.eq.s32.totalorder %s19, 0
    %p264 = por %p262, %p263
    %p265 = scmp.ne.s32.totalorder %s254, %s257
    %p266 = scmp.eq.s32.totalorder %s24, 1
    %p267 = por %p265, %p266
    %p268 = scmp.ne.s32.totalorder %s257, %s258
    %p269 = scmp.eq.s32.totalorder %s24, 0
    %p270 = por %p268, %p269
    %p271 = scmp.ne.s32.totalorder %s257, %s258
    %p272 = scmp.eq.s32.totalorder %s25, 1
    %p273 = por %p271, %p272
    %p275 = scmp.ne.s32.totalorder %s258, %s274
    %p276 = scmp.eq.s32.totalorder %s25, 0
    %p277 = por %p275, %p276
    %s278 = ssub.s32 %s19, %s26
    %p279 = scmp.eq.s32.totalorder %s278, 0
    %s281 = sadd.s32 %s280, 1
    %s282 = scalar_select %p279, %s280, %s281
    %p285 = pneg %p279
    %p286 = scmp.eq.s32.totalorder %s19, 1
    %p287 = por %p285, %p286
    %p288 = scmp.ne.s32.totalorder %s280, %s283
    %p289 = scmp.eq.s32.totalorder %s19, 0
    %p290 = por %p288, %p289
    %p291 = scmp.ne.s32.totalorder %s280, %s283
    %p292 = scmp.eq.s32.totalorder %s24, 1
    %p293 = por %p291, %p292
    %p294 = scmp.ne.s32.totalorder %s283, %s284
    %p295 = scmp.eq.s32.totalorder %s24, 0
    %p296 = por %p294, %p295
    %p297 = scmp.ne.s32.totalorder %s283, %s284
    %p298 = scmp.eq.s32.totalorder %s25, 1
    %p299 = por %p297, %p298
    %p301 = scmp.ne.s32.totalorder %s284, %s300
    %p302 = scmp.eq.s32.totalorder %s25, 0
    %p303 = por %p301, %p302
    %p304 = scmp.le.s32.totalorder 1, %s19
    %p305 = scmp.lt.s32.totalorder %s19, 3
    %p306 = pnand %p304, %p305
    %p307 = pneg %p306
    // Predicated region
    $region9: #{pgnn_forward.4} parent=5 // pred_check
      _
    $region10: #{pgnn_forward.4} parent=5 // pred_check_branch
      %309 = sbr.rel (%p306) target = $region12
    $region11: #{pgnn_forward.4} parent=5 // pred_region
      %s310 = ssub.s32 %s19, 1
      // Predicated region
      $region13: #{pgnn_forward.4} parent=11 // pred_check
        %p311 = pneg %p118
      $region14: #{pgnn_forward.4} parent=11 // pred_check_branch
        %313 = sbr.rel (%p311) target = $region16
      $region15: #{pgnn_forward.4} parent=11 // pred_region
        _
      $region16: #{pgnn_forward.4} parent=11 // pred_fallthru
        _
      // Predicated region
      $region17: #{pgnn_forward.4} parent=11 // pred_check
        %p314 = pneg %p139
      $region18: #{pgnn_forward.4} parent=11 // pred_check_branch
        %316 = sbr.rel (%p314) target = $region20
      $region19: #{pgnn_forward.4} parent=11 // pred_region
        _
      $region20: #{pgnn_forward.4} parent=11 // pred_fallthru
        _
      // Predicated region
      $region21: #{pgnn_forward.4} parent=11 // pred_check
        %p317 = pneg %p160
      $region22: #{pgnn_forward.4} parent=11 // pred_check_branch
        %319 = sbr.rel (%p317) target = $region24
      $region23: #{pgnn_forward.4} parent=11 // pred_region
        _
      $region24: #{pgnn_forward.4} parent=11 // pred_fallthru
        _
      // Predicated region
      $region25: #{pgnn_forward.4} parent=11 // pred_check
        %p320 = pneg %p181
      $region26: #{pgnn_forward.4} parent=11 // pred_check_branch
        %322 = sbr.rel (%p320) target = $region28
      $region27: #{pgnn_forward.4} parent=11 // pred_region
        _
      $region28: #{pgnn_forward.4} parent=11 // pred_fallthru
        _
      // Predicated region
      $region29: #{pgnn_forward.4} parent=11 // pred_check
        %p323 = pneg %p202
      $region30: #{pgnn_forward.4} parent=11 // pred_check_branch
        %325 = sbr.rel (%p323) target = $region32
      $region31: #{pgnn_forward.4} parent=11 // pred_region
        _
      $region32: #{pgnn_forward.4} parent=11 // pred_fallthru
        _
      // Predicated region
      $region33: #{pgnn_forward.4} parent=11 // pred_check
        %p326 = pneg %p223
      $region34: #{pgnn_forward.4} parent=11 // pred_check_branch
        %328 = sbr.rel (%p326) target = $region36
      $region35: #{pgnn_forward.4} parent=11 // pred_region
        _
      $region36: #{pgnn_forward.4} parent=11 // pred_fallthru
        _
      // Predicated region
      $region37: #{pgnn_forward.4} parent=11 // pred_check
        %p329 = pneg %p244
      $region38: #{pgnn_forward.4} parent=11 // pred_check_branch
        %331 = sbr.rel (%p329) target = $region40
      $region39: #{pgnn_forward.4} parent=11 // pred_region
        _
      $region40: #{pgnn_forward.4} parent=11 // pred_fallthru
        _
    $region12: #{pgnn_forward.4} parent=5 // pred_fallthru
      _
    %p332 = scmp.lt.s32.totalorder %s19, 2
    // Predicated region
    $region41: #{pgnn_forward.4} parent=5 // pred_check
      %p333 = pneg %p332
    $region42: #{pgnn_forward.4} parent=5 // pred_check_branch
      %335 = sbr.rel (%p333) target = $region44
    $region43: #{pgnn_forward.4} parent=5 // pred_region
      // Predicated region
      $region45: #{pgnn_forward.4} parent=43 // pred_check
        %p336 = pneg %p39
      $region46: #{pgnn_forward.4} parent=43 // pred_check_branch
        %338 = sbr.rel (%p336) target = $region48
      $region47: #{pgnn_forward.4} parent=43 // pred_region
        %p339 = scmp.lt.s32.totalorder %s19, 1
        %s340 = scalar_select %p339, %s19, 1
        %s341 = smul.addr %s340, 8
        %s342 = scalar_lea.vmem %s0, %s341
      $region48: #{pgnn_forward.4} parent=43 // pred_fallthru
        _
      // Predicated region
      $region49: #{pgnn_forward.4} parent=43 // pred_check
        %p343 = pneg %p65
      $region50: #{pgnn_forward.4} parent=43 // pred_check_branch
        %345 = sbr.rel (%p343) target = $region52
      $region51: #{pgnn_forward.4} parent=43 // pred_region
        %s346 = smul.u32 8, %s19
        %p347 = scmp.lt.s32.totalorder %s346, 15
        %s348 = scalar_select %p347, %s346, 15
        %s349 = smul.addr %s348, 8
        %s350 = scalar_lea.vmem %s1, %s349
        %s351 = smul.u32 8, %s19
      $region52: #{pgnn_forward.4} parent=43 // pred_fallthru
        _
      // Predicated region
      $region53: #{pgnn_forward.4} parent=43 // pred_check
        %p352 = pneg %p91
      $region54: #{pgnn_forward.4} parent=43 // pred_check_branch
        %354 = sbr.rel (%p352) target = $region56
      $region55: #{pgnn_forward.4} parent=43 // pred_region
        %p355 = scmp.lt.s32.totalorder %s19, 1
        %s356 = scalar_select %p355, %s19, 1
        %s357 = smul.addr %s356, 8
        %s358 = scalar_lea.vmem %s2, %s357
      $region56: #{pgnn_forward.4} parent=43 // pred_fallthru
        _
    $region44: #{pgnn_forward.4} parent=5 // pred_fallthru
      _
    %p359 = scmp.le.s32.totalorder 1, %s19
    %p360 = scmp.lt.s32.totalorder %s19, 3
    %p361 = pnand %p359, %p360
    %p362 = pneg %p361
    // Predicated region
    $region57: #{pgnn_forward.4} parent=5 // pred_check
      _
    $region58: #{pgnn_forward.4} parent=5 // pred_check_branch
      %364 = sbr.rel (%p361) target = $region60
    $region59: #{pgnn_forward.4} parent=5 // pred_region
      %s365 = ssub.s32 %s19, 1
      %p366 = scmp.lt.s32.totalorder %s24, 1
      %s367 = scalar_select %p366, %s24, 1
      %s368 = smul.addr %s367, 8
      %s369 = scalar_lea.vmem %s0, %s368
      %p370 = pneg %p45
      %p371 = pneg %p42
      %s372 = smul.u32 8, %s24
      %p373 = scmp.lt.s32.totalorder %s372, 15
      %s374 = scalar_select %p373, %s372, 15
      %s375 = smul.addr %s374, 8
      %s376 = scalar_lea.vmem %s1, %s375
      %p377 = pneg %p71
      %p378 = pneg %p68
      %p379 = scmp.lt.s32.totalorder %s24, 1
      %s380 = scalar_select %p379, %s24, 1
      %s381 = smul.addr %s380, 8
      %s382 = scalar_lea.vmem %s2, %s381
      %p383 = pneg %p97
      %p384 = pneg %p94
      %p385 = pneg %p118
      %p386 = pneg %p115
      %p387 = pneg %p139
      %p388 = pneg %p136
      %p389 = pneg %p160
      %p390 = pneg %p157
      %p391 = pneg %p181
      %p392 = pneg %p178
      %p393 = pneg %p202
      %p394 = pneg %p199
      %p395 = pneg %p223
      %p396 = pneg %p220
      %p397 = pneg %p244
      %p398 = pneg %p241
      %p399 = pneg %p270
      %p400 = pneg %p267
      %p401 = scmp.lt.s32.totalorder %s24, 1
      %s402 = scalar_select %p401, %s24, 1
      %s403 = smul.addr %s402, 8
      %s404 = scalar_lea.vmem %s10, %s403
      %p405 = pneg %p296
      %p406 = pneg %p293
      %p407 = scmp.lt.s32.totalorder %s24, 1
      %s408 = scalar_select %p407, %s24, 1
      %s409 = smul.addr %s408, 8
      %s410 = scalar_lea.vmem %s11, %s409
      %p411 = scmp.lt.s32.totalorder %s24, 1
      %s412 = scalar_select %p411, %s24, 1
      %s413 = smul.addr %s412, 8
      %s414 = scalar_lea.vmem %s0, %s413
      %s415 = smul.u32 8, %s24
      %p416 = scmp.lt.s32.totalorder %s415, 15
      %s417 = scalar_select %p416, %s415, 15
      %s418 = smul.addr %s417, 8
      %s419 = scalar_lea.vmem %s1, %s418
      %s420 = smul.u32 8, %s24
      %p421 = scmp.lt.s32.totalorder %s24, 1
      %s422 = scalar_select %p421, %s24, 1
      %s423 = smul.addr %s422, 8
      %s424 = scalar_lea.vmem %s2, %s423
      %p425 = scmp.lt.s32.totalorder %s24, 1
      %s426 = scalar_select %p425, %s24, 1
      %s427 = smul.addr %s426, 8
      %s428 = scalar_lea.vmem %s10, %s427
      %p429 = scmp.lt.s32.totalorder %s24, 1
      %s430 = scalar_select %p429, %s24, 1
      %s431 = smul.addr %s430, 8
      %s432 = scalar_lea.vmem %s11, %s431
      %v433 = vld [vmem:[%s419] sm:$0xff]
      %v434 = vld [vmem:[%s419 + $0x8] sm:$0xff]
      %v435 = vld [vmem:[%s419 + $0x10] sm:$0xff]
      %v436 = vld [vmem:[%s419 + $0x18] sm:$0xff]
      %v437 = vld [vmem:[%s419 + $0x20] sm:$0xff]
      %v438 = vld [vmem:[%s419 + $0x28] sm:$0xff]
      %v439 = vld [vmem:[%s419 + $0x30] sm:$0xff]
      %v440 = vld [vmem:[%s419 + $0x38] sm:$0xff]
      %v441 = vld [vmem:[%s414] sm:$0xff]
      %v442 = vld [vmem:[%s424] sm:$0xff]
      %v443 = vld [vmem:[%s3] sm:$0xff]
      %v444 = vld [vmem:[%s3 + $0x8] sm:$0xff]
      %v445 = vld [vmem:[%s4] sm:$0x1]
      %v446 = vld [vmem:[%s5] sm:$0x1]
      %v447 = vld [vmem:[%s6] sm:$0x1]
      %v448 = vld [vmem:[%s7] sm:$0x1]
      %s449 = sld [smem:[#allocation2]]
      %v450 = vlaneseq
      %v451 = vshrl.u32 %v450, 7
      %v452 = vsub.s32 0, %v451
      %v453 = vrot.slane %v442, %v452
      %455 = vbcast.lane.b32.xlu0 %v453, 256
      %v456 = vpop.permute.xlu0 %455
      %v457 = vlaneseq
      %v458 = vshrl.u32 %v457, 7
      %v459 = vsub.s32 1, %v458
      %v460 = vrot.slane %v442, %v459
      %462 = vbcast.lane.b32.xlu0 %v460, 256
      %v463 = vpop.permute.xlu0 %462
      %v464 = vlaneseq
      %v465 = vshrl.u32 %v464, 7
      %v466 = vsub.s32 2, %v465
      %v467 = vrot.slane %v442, %v466
      %469 = vbcast.lane.b32.xlu0 %v467, 256
      %v470 = vpop.permute.xlu0 %469
      %v471 = vlaneseq
      %v472 = vshrl.u32 %v471, 7
      %v473 = vsub.s32 3, %v472
      %v474 = vrot.slane %v442, %v473
      %476 = vbcast.lane.b32.xlu0 %v474, 256
      %v477 = vpop.permute.xlu0 %476
      %v478 = vlaneseq
      %v479 = vshrl.u32 %v478, 7
      %v480 = vsub.s32 4, %v479
      %v481 = vrot.slane %v442, %v480
      %483 = vbcast.lane.b32.xlu0 %v481, 256
      %v484 = vpop.permute.xlu0 %483
      %v485 = vlaneseq
      %v486 = vshrl.u32 %v485, 7
      %v487 = vsub.s32 5, %v486
      %v488 = vrot.slane %v442, %v487
      %490 = vbcast.lane.b32.xlu0 %v488, 256
      %v491 = vpop.permute.xlu0 %490
      %v492 = vlaneseq
      %v493 = vshrl.u32 %v492, 7
      %v494 = vsub.s32 6, %v493
      %v495 = vrot.slane %v442, %v494
      %497 = vbcast.lane.b32.xlu0 %v495, 256
      %v498 = vpop.permute.xlu0 %497
      %v499 = vlaneseq
      %v500 = vshrl.u32 %v499, 7
      %v501 = vsub.s32 7, %v500
      %v502 = vrot.slane %v442, %v501
      %504 = vbcast.lane.b32.xlu0 %v502, 256
      %v505 = vpop.permute.xlu0 %504
      %v507 = vlaneseq
      %v508 = vshrl.u32 %v507, 7
      %v509 = vsub.s32 0, %v508
      %v510 = vrot.slane %v446, %v509
      %v512 = vmul.f32 %v456, %v510
      %v513 = vmul.f32 %v463, %v510
      %v514 = vmul.f32 %v470, %v510
      %v515 = vmul.f32 %v477, %v510
      %v516 = vmul.f32 %v484, %v510
      %v517 = vmul.f32 %v491, %v510
      %v518 = vmul.f32 %v498, %v510
      %v519 = vmul.f32 %v505, %v510
      %v521 = vlaneseq
      %v522 = vshrl.u32 %v521, 7
      %v523 = vsub.s32 0, %v522
      %v524 = vrot.slane %v447, %v523
      %v526 = vadd.f32 %v512, %v524
      %v527 = vadd.f32 %v513, %v524
      %v528 = vadd.f32 %v514, %v524
      %v529 = vadd.f32 %v515, %v524
      %v530 = vadd.f32 %v516, %v524
      %v531 = vadd.f32 %v517, %v524
      %v532 = vadd.f32 %v518, %v524
      %v533 = vadd.f32 %v519, %v524
      %v534 = vmax.f32 %v526, 0.0
      %v535 = vmax.f32 %v527, 0.0
      %v536 = vmax.f32 %v528, 0.0
      %v537 = vmax.f32 %v529, 0.0
      %v538 = vmax.f32 %v530, 0.0
      %v539 = vmax.f32 %v531, 0.0
      %v540 = vmax.f32 %v532, 0.0
      %v541 = vmax.f32 %v533, 0.0
      %v543 = vlaneseq
      %v544 = vshrl.u32 %v543, 7
      %v545 = vsub.s32 0, %v544
      %v546 = vrot.slane %v448, %v545
      %v548 = vmul.f32 %v534, %v546
      %v549 = vmul.f32 %v535, %v546
      %v550 = vmul.f32 %v536, %v546
      %v551 = vmul.f32 %v537, %v546
      %v552 = vmul.f32 %v538, %v546
      %v553 = vmul.f32 %v539, %v546
      %v554 = vmul.f32 %v540, %v546
      %v555 = vmul.f32 %v541, %v546
      %vm556 = vcmask 130048
      %v557 = vsel %vm556, %v548, 0.0
      %558 = vadd.xlane.f32.xlu0 %v557
      %v559 = vpop.xlane.xlu0 %558
      %v560 = vsel %vm556, %v549, 0.0
      %561 = vadd.xlane.f32.xlu0 %v560
      %v562 = vpop.xlane.xlu0 %561
      %v563 = vsel %vm556, %v550, 0.0
      %564 = vadd.xlane.f32.xlu0 %v563
      %v565 = vpop.xlane.xlu0 %564
      %v566 = vsel %vm556, %v551, 0.0
      %567 = vadd.xlane.f32.xlu0 %v566
      %v568 = vpop.xlane.xlu0 %567
      %v569 = vsel %vm556, %v552, 0.0
      %570 = vadd.xlane.f32.xlu0 %v569
      %v571 = vpop.xlane.xlu0 %570
      %v572 = vsel %vm556, %v553, 0.0
      %573 = vadd.xlane.f32.xlu0 %v572
      %v574 = vpop.xlane.xlu0 %573
      %v575 = vsel %vm556, %v554, 0.0
      %576 = vadd.xlane.f32.xlu0 %v575
      %v577 = vpop.xlane.xlu0 %576
      %v578 = vsel %vm556, %v555, 0.0
      %579 = vadd.xlane.f32.xlu0 %v578
      %v580 = vpop.xlane.xlu0 %579
      %v581 = vstv %s449
      %v582 = vadd.f32 %v559, %v581
      %v583 = vadd.f32 %v562, %v581
      %v584 = vadd.f32 %v565, %v581
      %v585 = vadd.f32 %v568, %v581
      %v586 = vadd.f32 %v571, %v581
      %v587 = vadd.f32 %v574, %v581
      %v588 = vadd.f32 %v577, %v581
      %v589 = vadd.f32 %v580, %v581
      %v591 = vlaneseq
      %v592 = vshrl.u32 %v591, 7
      %v593 = vsub.s32 0, %v592
      %v594 = vrot.slane %v445, %v593
      %v597 = vsel %vm556, %v441, 0
      %599 = vmatprep.subr.mxu0 0.0
      %600 = vmatpush1.msra.mxu0 0.0
      %601 = vmatprep.subr.mxu0 0.0
      %602 = vmatpush1.msra.mxu0 0.0
      %603 = vmatprep.subr.mxu0 0.0
      %604 = vmatpush1.msra.mxu0 0.0
      %605 = vmatprep.subr.mxu0 0.0
      %606 = vmatpush1.msra.mxu0 0.0
      %607 = vmatprep.subr.mxu0 0.0
      %608 = vmatpush1.msra.mxu0 0.0
      %609 = vmatprep.subr.mxu0 0.0
      %610 = vmatpush1.msra.mxu0 0.0
      %611 = vmatprep.subr.mxu0 0.0
      %612 = vmatpush1.msra.mxu0 0.0
      %613 = vmatprep.subr.mxu0 0.0
      %614 = vmatpush1.msra.mxu0 0.0
      %615 = vmatprep.subr.mxu0 0.0
      %616 = vmatpush1.msra.mxu0 0.0
      %617 = vmatprep.subr.mxu0 0.0
      %618 = vmatpush1.msra.mxu0 0.0
      %619 = vmatprep.subr.mxu0 0.0
      %620 = vmatpush1.msra.mxu0 0.0
      %621 = vmatprep.subr.mxu0 0.0
      %622 = vmatpush1.msra.mxu0 0.0
      %623 = vmatprep.subr.mxu0 0.0
      %624 = vmatpush1.msra.mxu0 0.0
      %625 = vmatprep.subr.mxu0 0.0
      %626 = vmatpush1.msra.mxu0 0.0
      %627 = vmatprep.subr.mxu0 0.0
      %628 = vmatpush1.msra.mxu0 %v444
      %629 = vmatprep.subr.mxu0 0.0
      %630 = vmatpush1.msra.mxu0 %v443
      %631 = vmatprep.subr.mxu0 0.0
      %632 = vmatpush2.msra.mxu0 0.0
      %633 = vmatprep.subr.mxu0 0.0
      %634 = vmatpush2.msra.mxu0 0.0
      %635 = vmatprep.subr.mxu0 0.0
      %636 = vmatpush2.msra.mxu0 0.0
      %637 = vmatprep.subr.mxu0 0.0
      %638 = vmatpush2.msra.mxu0 0.0
      %639 = vmatprep.subr.mxu0 0.0
      %640 = vmatpush2.msra.mxu0 0.0
      %641 = vmatprep.subr.mxu0 0.0
      %642 = vmatpush2.msra.mxu0 0.0
      %643 = vmatprep.subr.mxu0 0.0
      %644 = vmatpush2.msra.mxu0 0.0
      %645 = vmatprep.subr.mxu0 0.0
      %646 = vmatpush2.msra.mxu0 0.0
      %647 = vmatprep.subr.mxu0 0.0
      %648 = vmatpush2.msra.mxu0 0.0
      %649 = vmatprep.subr.mxu0 0.0
      %650 = vmatpush2.msra.mxu0 0.0
      %651 = vmatprep.subr.mxu0 0.0
      %652 = vmatpush2.msra.mxu0 0.0
      %653 = vmatprep.subr.mxu0 0.0
      %654 = vmatpush2.msra.mxu0 0.0
      %655 = vmatprep.subr.mxu0 0.0
      %656 = vmatpush2.msra.mxu0 0.0
      %657 = vmatprep.subr.mxu0 0.0
      %658 = vmatpush2.msra.mxu0 0.0
      %659 = vmatprep.subr.mxu0 0.0
      %660 = vmatpush2.msra.mxu0 0.0
      %661 = vmatprep.subr.mxu0 0.0
      %662 = vmatpush2.msra.mxu0 0.0
      %663 = vmatprep.mubr.f32.mxu0 0.0
      %664 = vmatmul.mubr.f32.gmra.mxu0 %v597
      %v665 = vpop.f32.mrf.mxu0
      %v666 = vadd.f32 %v594, %v665
      %v667 = vpop.f32.mrf.mxu0
      %668 = vdwg.mxu0
      %v669 = vmul.f32 %v582, %v433
      %v670 = vmul.f32 %v583, %v434
      %v671 = vmul.f32 %v584, %v435
      %v672 = vmul.f32 %v585, %v436
      %v673 = vmul.f32 %v586, %v437
      %v674 = vmul.f32 %v587, %v438
      %v675 = vmul.f32 %v588, %v439
      %v676 = vmul.f32 %v589, %v440
      %v678 = vcombine.high %v666, %v666
      %v680 = vunpack.c.l.s4 1966171168
      %v681 = vunpack.c.0.s8 %v680
      %v682 = vlaneseq
      %v683 = vshrl.u32 %v682, 7
      %v684 = vsub.s32 %v681, %v683
      %v685 = vrot.slane %v666, %v684
      %v687 = vunpack.c.l.s4 1966171168
      %v688 = vunpack.c.0.s8 %v687
      %v689 = vlaneseq
      %v690 = vshrl.u32 %v689, 7
      %v691 = vsub.s32 %v688, %v690
      %v692 = vrot.slane %v678, %v691
      %v693 = vcombine.high %v685, %v685
      %v694 = vcombine.high %v692, %v692
      %v696 = vunpack.c.l.s4 1966171168
      %v697 = vunpack.c.0.s8 %v696
      %v698 = vlaneseq
      %v699 = vshrl.u32 %v698, 7
      %v700 = vsub.s32 %v697, %v699
      %v701 = vrot.slane %v685, %v700
      %v703 = vunpack.c.l.s4 1966171168
      %v704 = vunpack.c.0.s8 %v703
      %v705 = vlaneseq
      %v706 = vshrl.u32 %v705, 7
      %v707 = vsub.s32 %v704, %v706
      %v708 = vrot.slane %v692, %v707
      %v710 = vunpack.c.l.s4 1966171168
      %v711 = vunpack.c.0.s8 %v710
      %v712 = vlaneseq
      %v713 = vshrl.u32 %v712, 7
      %v714 = vsub.s32 %v711, %v713
      %v715 = vrot.slane %v693, %v714
      %v717 = vunpack.c.l.s4 1966171168
      %v718 = vunpack.c.0.s8 %v717
      %v719 = vlaneseq
      %v720 = vshrl.u32 %v719, 7
      %v721 = vsub.s32 %v718, %v720
      %v722 = vrot.slane %v694, %v721
      %v723 = vcombine.high %v701, %v701
      %v724 = vcombine.high %v708, %v708
      %v725 = vcombine.high %v715, %v715
      %v726 = vcombine.high %v722, %v722
      %v727 = vlaneseq
      %v728 = vshrl.u32 %v727, 7
      %v729 = vsub.s32 0, %v728
      %v730 = vrot.slane %v701, %v729
      %v731 = vlaneseq
      %v732 = vshrl.u32 %v731, 7
      %v733 = vsub.s32 0, %v732
      %v734 = vrot.slane %v715, %v733
      %v735 = vlaneseq
      %v736 = vshrl.u32 %v735, 7
      %v737 = vsub.s32 0, %v736
      %v738 = vrot.slane %v723, %v737
      %v739 = vlaneseq
      %v740 = vshrl.u32 %v739, 7
      %v741 = vsub.s32 0, %v740
      %v742 = vrot.slane %v725, %v741
      %v743 = vlaneseq
      %v744 = vshrl.u32 %v743, 7
      %v745 = vsub.s32 0, %v744
      %v746 = vrot.slane %v708, %v745
      %v747 = vlaneseq
      %v748 = vshrl.u32 %v747, 7
      %v749 = vsub.s32 0, %v748
      %v750 = vrot.slane %v722, %v749
      %v751 = vlaneseq
      %v752 = vshrl.u32 %v751, 7
      %v753 = vsub.s32 0, %v752
      %v754 = vrot.slane %v724, %v753
      %v755 = vlaneseq
      %v756 = vshrl.u32 %v755, 7
      %v757 = vsub.s32 0, %v756
      %v758 = vrot.slane %v726, %v757
      %v767 = vadd.f32 %v669, %v730
      %v768 = vadd.f32 %v670, %v734
      %v769 = vadd.f32 %v671, %v738
      %v770 = vadd.f32 %v672, %v742
      %v771 = vadd.f32 %v673, %v746
      %v772 = vadd.f32 %v674, %v750
      %v773 = vadd.f32 %v675, %v754
      %v774 = vadd.f32 %v676, %v758
      %v775 = vmax.f32 %v767, 0.0
      %v776 = vmax.f32 %v768, 0.0
      %v777 = vmax.f32 %v769, 0.0
      %v778 = vmax.f32 %v770, 0.0
      %v779 = vmax.f32 %v771, 0.0
      %v780 = vmax.f32 %v772, 0.0
      %v781 = vmax.f32 %v773, 0.0
      %v782 = vmax.f32 %v774, 0.0
      %v783 = vsel %vm556, %v775, 0.0
      %v784 = vrot.slane %v783, 4
      %v785 = vadd.f32 %v783, %v784
      %v786 = vrot.slane %v785, 2
      %v787 = vadd.f32 %v785, %v786
      %v788 = vrot.slane %v787, 1
      %v789 = vadd.f32 %v787, %v788
      %v790 = vsel %vm556, %v776, 0.0
      %v791 = vrot.slane %v790, 4
      %v792 = vadd.f32 %v790, %v791
      %v793 = vrot.slane %v792, 2
      %v794 = vadd.f32 %v792, %v793
      %v795 = vrot.slane %v794, 1
      %v796 = vadd.f32 %v794, %v795
      %v797 = vsel %vm556, %v777, 0.0
      %v798 = vrot.slane %v797, 4
      %v799 = vadd.f32 %v797, %v798
      %v800 = vrot.slane %v799, 2
      %v801 = vadd.f32 %v799, %v800
      %v802 = vrot.slane %v801, 1
      %v803 = vadd.f32 %v801, %v802
      %v804 = vsel %vm556, %v778, 0.0
      %v805 = vrot.slane %v804, 4
      %v806 = vadd.f32 %v804, %v805
      %v807 = vrot.slane %v806, 2
      %v808 = vadd.f32 %v806, %v807
      %v809 = vrot.slane %v808, 1
      %v810 = vadd.f32 %v808, %v809
      %v811 = vsel %vm556, %v779, 0.0
      %v812 = vrot.slane %v811, 4
      %v813 = vadd.f32 %v811, %v812
      %v814 = vrot.slane %v813, 2
      %v815 = vadd.f32 %v813, %v814
      %v816 = vrot.slane %v815, 1
      %v817 = vadd.f32 %v815, %v816
      %v818 = vsel %vm556, %v780, 0.0
      %v819 = vrot.slane %v818, 4
      %v820 = vadd.f32 %v818, %v819
      %v821 = vrot.slane %v820, 2
      %v822 = vadd.f32 %v820, %v821
      %v823 = vrot.slane %v822, 1
      %v824 = vadd.f32 %v822, %v823
      %v825 = vsel %vm556, %v781, 0.0
      %v826 = vrot.slane %v825, 4
      %v827 = vadd.f32 %v825, %v826
      %v828 = vrot.slane %v827, 2
      %v829 = vadd.f32 %v827, %v828
      %v830 = vrot.slane %v829, 1
      %v831 = vadd.f32 %v829, %v830
      %v832 = vsel %vm556, %v782, 0.0
      %v833 = vrot.slane %v832, 4
      %v834 = vadd.f32 %v832, %v833
      %v835 = vrot.slane %v834, 2
      %v836 = vadd.f32 %v834, %v835
      %v837 = vrot.slane %v836, 1
      %v838 = vadd.f32 %v836, %v837
      %v839 = vmul.f32 %v789, 0.125
      %v840 = vmul.f32 %v796, 0.125
      %v841 = vmul.f32 %v803, 0.125
      %v842 = vmul.f32 %v810, 0.125
      %v843 = vmul.f32 %v817, 0.125
      %v844 = vmul.f32 %v824, 0.125
      %v845 = vmul.f32 %v831, 0.125
      %v846 = vmul.f32 %v838, 0.125
      %vm855 = vcmask 1041409
      %v856 = vsel %vm855, %v840, %v839
      %vm857 = vcmask 1042434
      %v858 = vsel %vm857, %v841, %v856
      %vm859 = vcmask 1043459
      %v860 = vsel %vm859, %v842, %v858
      %vm861 = vcmask 1044484
      %v862 = vsel %vm861, %v843, %v860
      %vm863 = vcmask 1045509
      %v864 = vsel %vm863, %v844, %v862
      %vm865 = vcmask 1046534
      %v866 = vsel %vm865, %v845, %v864
      %vm867 = vcmask 1047559
      %v868 = vsel %vm867, %v846, %v866
      %870 = vst.msk [vmem:[%s428] sm:$0xff] %vm556, %v868
      %v871 = vld [vmem:[%s9] sm:$0xff]
      %v872 = vld [vmem:[%s9 + $0x8] sm:$0xff]
      %v873 = vsel %vm556, %v868, 0
      %875 = vmatprep.subr.mxu0 0.0
      %876 = vmatpush1.msra.mxu0 0.0
      %877 = vmatprep.subr.mxu0 0.0
      %878 = vmatpush1.msra.mxu0 0.0
      %879 = vmatprep.subr.mxu0 0.0
      %880 = vmatpush1.msra.mxu0 0.0
      %881 = vmatprep.subr.mxu0 0.0
      %882 = vmatpush1.msra.mxu0 0.0
      %883 = vmatprep.subr.mxu0 0.0
      %884 = vmatpush1.msra.mxu0 0.0
      %885 = vmatprep.subr.mxu0 0.0
      %886 = vmatpush1.msra.mxu0 0.0
      %887 = vmatprep.subr.mxu0 0.0
      %888 = vmatpush1.msra.mxu0 0.0
      %889 = vmatprep.subr.mxu0 0.0
      %890 = vmatpush1.msra.mxu0 0.0
      %891 = vmatprep.subr.mxu0 0.0
      %892 = vmatpush1.msra.mxu0 0.0
      %893 = vmatprep.subr.mxu0 0.0
      %894 = vmatpush1.msra.mxu0 0.0
      %895 = vmatprep.subr.mxu0 0.0
      %896 = vmatpush1.msra.mxu0 0.0
      %897 = vmatprep.subr.mxu0 0.0
      %898 = vmatpush1.msra.mxu0 0.0
      %899 = vmatprep.subr.mxu0 0.0
      %900 = vmatpush1.msra.mxu0 0.0
      %901 = vmatprep.subr.mxu0 0.0
      %902 = vmatpush1.msra.mxu0 0.0
      %903 = vmatprep.subr.mxu0 0.0
      %904 = vmatpush1.msra.mxu0 %v872
      %905 = vmatprep.subr.mxu0 0.0
      %906 = vmatpush1.msra.mxu0 %v871
      %907 = vmatprep.subr.mxu0 0.0
      %908 = vmatpush2.msra.mxu0 0.0
      %909 = vmatprep.subr.mxu0 0.0
      %910 = vmatpush2.msra.mxu0 0.0
      %911 = vmatprep.subr.mxu0 0.0
      %912 = vmatpush2.msra.mxu0 0.0
      %913 = vmatprep.subr.mxu0 0.0
      %914 = vmatpush2.msra.mxu0 0.0
      %915 = vmatprep.subr.mxu0 0.0
      %916 = vmatpush2.msra.mxu0 0.0
      %917 = vmatprep.subr.mxu0 0.0
      %918 = vmatpush2.msra.mxu0 0.0
      %919 = vmatprep.subr.mxu0 0.0
      %920 = vmatpush2.msra.mxu0 0.0
      %921 = vmatprep.subr.mxu0 0.0
      %922 = vmatpush2.msra.mxu0 0.0
      %923 = vmatprep.subr.mxu0 0.0
      %924 = vmatpush2.msra.mxu0 0.0
      %925 = vmatprep.subr.mxu0 0.0
      %926 = vmatpush2.msra.mxu0 0.0
      %927 = vmatprep.subr.mxu0 0.0
      %928 = vmatpush2.msra.mxu0 0.0
      %929 = vmatprep.subr.mxu0 0.0
      %930 = vmatpush2.msra.mxu0 0.0
      %931 = vmatprep.subr.mxu0 0.0
      %932 = vmatpush2.msra.mxu0 0.0
      %933 = vmatprep.subr.mxu0 0.0
      %934 = vmatpush2.msra.mxu0 0.0
      %935 = vmatprep.subr.mxu0 0.0
      %936 = vmatpush2.msra.mxu0 0.0
      %937 = vmatprep.subr.mxu0 0.0
      %938 = vmatpush2.msra.mxu0 0.0
      %939 = vmatprep.mubr.f32.mxu0 0.0
      %940 = vmatmul.mubr.f32.gmra.mxu0 %v873
      %v941 = vpop.f32.mrf.mxu0
      %v942 = vadd.f32 0.0, %v941
      %v943 = vpop.f32.mrf.mxu0
      %944 = vdwg.mxu0
      %vm945 = vcmask 64512
      %946 = vst.msk [vmem:[%s432] sm:$0xff] %vm945, %v942
      %p947 = scmp.lt.s32.totalorder %s24, 1
      %s948 = scalar_select %p947, %s24, 1
      %s949 = smul.addr %s948, 8
      %s950 = scalar_lea.vmem %s10, %s949
      %p951 = scmp.lt.s32.totalorder %s24, 1
      %s952 = scalar_select %p951, %s24, 1
      %s953 = smul.addr %s952, 8
      %s954 = scalar_lea.vmem %s11, %s953
      // Predicated region
      $region61: #{pgnn_forward.4} parent=59 // pred_check
        %p955 = pneg %p267
      $region62: #{pgnn_forward.4} parent=59 // pred_check_branch
        %957 = sbr.rel (%p955) target = $region64
      $region63: #{pgnn_forward.4} parent=59 // pred_region
        _
      $region64: #{pgnn_forward.4} parent=59 // pred_fallthru
        _
      // Predicated region
      $region65: #{pgnn_forward.4} parent=59 // pred_check
        %p958 = pneg %p293
      $region66: #{pgnn_forward.4} parent=59 // pred_check_branch
        %960 = sbr.rel (%p958) target = $region68
      $region67: #{pgnn_forward.4} parent=59 // pred_region
        _
      $region68: #{pgnn_forward.4} parent=59 // pred_fallthru
        _
    $region60: #{pgnn_forward.4} parent=5 // pred_fallthru
      _
    %p961 = scmp.le.s32.totalorder 2, %s19
    // Predicated region
    $region69: #{pgnn_forward.4} parent=5 // pred_check
      %p962 = pneg %p961
    $region70: #{pgnn_forward.4} parent=5 // pred_check_branch
      %964 = sbr.rel (%p962) target = $region72
    $region71: #{pgnn_forward.4} parent=5 // pred_region
      %s965 = ssub.s32 %s19, 2
      // Predicated region
      $region73: #{pgnn_forward.4} parent=71 // pred_check
        %p966 = pneg %p273
      $region74: #{pgnn_forward.4} parent=71 // pred_check_branch
        %968 = sbr.rel (%p966) target = $region76
      $region75: #{pgnn_forward.4} parent=71 // pred_region
        %p969 = scmp.lt.s32.totalorder %s25, 1
        %s970 = scalar_select %p969, %s25, 1
        %s971 = smul.addr %s970, 8
        %s972 = scalar_lea.vmem %s10, %s971
      $region76: #{pgnn_forward.4} parent=71 // pred_fallthru
        _
      // Predicated region
      $region77: #{pgnn_forward.4} parent=71 // pred_check
        %p973 = pneg %p299
      $region78: #{pgnn_forward.4} parent=71 // pred_check_branch
        %975 = sbr.rel (%p973) target = $region80
      $region79: #{pgnn_forward.4} parent=71 // pred_region
        %p976 = scmp.lt.s32.totalorder %s25, 1
        %s977 = scalar_select %p976, %s25, 1
        %s978 = smul.addr %s977, 8
        %s979 = scalar_lea.vmem %s11, %s978
      $region80: #{pgnn_forward.4} parent=71 // pred_fallthru
        _
    $region72: #{pgnn_forward.4} parent=5 // pred_fallthru
      _
  $region6: #{pgnn_forward.4} parent=0 // loop_footer
    %s23 = sadd.s32 1, %s19
  $region7: #{pgnn_forward.4} parent=0 // loop_footer_branch
    %18 = sbr.rel target = $region3
  $region8: #{pgnn_forward.4} parent=0 // loop_exit
    _

// kernel: pgnn_forward.5
$region0: #{pgnn_forward.5}
  #allocation0 [shape = 'u32[]', space=smem, size = 0x4, offset = 0x4, fixed_abs, tag = 'smem constant byte address 0x4 - core index']
  #allocation1 [shape = 'u32[144,128]{1,0:T(1,128)}', space=vmem, size = 0x12000, scoped, tag = 'internal scratch']
  #allocation2 [shape = 'f32[1]{0:T(128)S(6)}', space=smem, size = 0x200, scoped, tag = 'scoped memory for pgnn_forward.5']
  #allocation3 [shape = 'f32[1]{0:T(128)S(6)}', space=smem, size = 0x200, scoped, tag = 'scoped memory for pgnn_forward.5']
  %s0 = inlined_call_operand.vmem [shape: f32[16,16], index: 0, kind: input, shape index: {}]
  %s1 = inlined_call_operand.vmem [shape: f32[16,8,8], index: 1, kind: input, shape index: {}]
  %s2 = inlined_call_operand.vmem [shape: f32[16,8], index: 2, kind: input, shape index: {}]
  %s3 = inlined_call_operand.vmem [shape: f32[16,8], index: 3, kind: input, shape index: {}]
  %s4 = inlined_call_operand.vmem [shape: f32[1,8], index: 4, kind: input, shape index: {}]
  %s5 = inlined_call_operand.vmem [shape: f32[1,8], index: 5, kind: input, shape index: {}]
  %s6 = inlined_call_operand.vmem [shape: f32[1,8], index: 6, kind: input, shape index: {}]
  %s7 = inlined_call_operand.vmem [shape: f32[1,8], index: 7, kind: input, shape index: {}]
  %s8 = inlined_call_operand.<no memory space> [shape: f32[1], index: 8, kind: input, shape index: {}]
  %s9 = inlined_call_operand.vmem [shape: f32[1,8], index: 9, kind: input, shape index: {}]
  %s10 = inlined_call_operand.<no memory space> [shape: f32[1], index: 10, kind: input, shape index: {}]
  %s11 = inlined_call_operand.vmem [shape: f32[16,8], index: 11, kind: output, shape index: {}]
  %s12 = sld [smem:[#allocation0]]
  $region77: #{pgnn_forward.5} parent=0
    _
  %s14 = ssub.s32 1, %s12
  %s15 = scalar_select 0, %s14, %s12
  %16 = sst [smem:[#allocation2]] %s8
  %17 = sst [smem:[#allocation3]] %s10
  loop: start=0, step=1, limit=4
  $region2: #{pgnn_forward.5} parent=0 // loop_pre_header
    _
  $region3: #{pgnn_forward.5} parent=0 // loop_header
    %s19 = sphi 0, %s23
    %p20 = scmp.ge.s32.totalorder %s19, 4
    %s29 = sphi 0, %s31
    %s32 = sphi 0, %s29
    %s33 = sphi 0, %s32
    %s49 = sphi 0, %s33
    %s55 = sphi 0, %s57
    %s58 = sphi 0, %s55
    %s59 = sphi 0, %s58
    %s75 = sphi 0, %s59
    %s81 = sphi 0, %s83
    %s84 = sphi 0, %s81
    %s85 = sphi 0, %s84
    %s101 = sphi 0, %s85
    %s105 = sphi 0, %s105
    %s107 = sphi 0, %s105
    %s108 = sphi 0, %s107
    %s122 = sphi 0, %s108
    %s126 = sphi 0, %s126
    %s128 = sphi 0, %s126
    %s129 = sphi 0, %s128
    %s143 = sphi 0, %s129
    %s147 = sphi 0, %s147
    %s149 = sphi 0, %s147
    %s150 = sphi 0, %s149
    %s164 = sphi 0, %s150
    %s168 = sphi 0, %s168
    %s170 = sphi 0, %s168
    %s171 = sphi 0, %s170
    %s185 = sphi 0, %s171
    %s189 = sphi 0, %s189
    %s191 = sphi 0, %s189
    %s192 = sphi 0, %s191
    %s206 = sphi 0, %s192
    %s210 = sphi 0, %s210
    %s212 = sphi 0, %s210
    %s213 = sphi 0, %s212
    %s227 = sphi 0, %s213
    %s231 = sphi 0, %s231
    %s233 = sphi 0, %s231
    %s234 = sphi 0, %s233
    %s248 = sphi 0, %s234
    %s252 = sphi 0, %s252
    %s254 = sphi 0, %s252
    %s255 = sphi 0, %s254
    %s269 = sphi 0, %s255
    %s275 = sphi 0, %s277
    %s278 = sphi 0, %s275
    %s279 = sphi 0, %s278
    %s295 = sphi 0, %s279
  $region4: #{pgnn_forward.5} parent=0 // loop_header_branch
    %22 = sbr.rel (%p20) target = $region8
  $region5: #{pgnn_forward.5} parent=0 // loop_body
    %s24 = ssub.s32 %s19, 1
    %s25 = ssub.s32 %s19, 2
    %s26 = sadd.s32 %s19, 1
    %s27 = ssub.s32 %s19, %s26
    %p28 = scmp.eq.s32.totalorder %s27, 0
    %s30 = sadd.s32 %s29, 1
    %s31 = scalar_select %p28, %s29, %s30
    %p34 = pneg %p28
    %p35 = scmp.eq.s32.totalorder %s19, 1
    %p36 = por %p34, %p35
    %p37 = scmp.ne.s32.totalorder %s29, %s32
    %p38 = scmp.eq.s32.totalorder %s19, 0
    %p39 = por %p37, %p38
    %p40 = scmp.ne.s32.totalorder %s29, %s32
    %p41 = scmp.eq.s32.totalorder %s24, 1
    %p42 = por %p40, %p41
    %p43 = scmp.ne.s32.totalorder %s32, %s33
    %p44 = scmp.eq.s32.totalorder %s24, 0
    %p45 = por %p43, %p44
    %p46 = scmp.ne.s32.totalorder %s32, %s33
    %p47 = scmp.eq.s32.totalorder %s25, 1
    %p48 = por %p46, %p47
    %p50 = scmp.ne.s32.totalorder %s33, %s49
    %p51 = scmp.eq.s32.totalorder %s25, 0
    %p52 = por %p50, %p51
    %s53 = ssub.s32 %s19, %s26
    %p54 = scmp.eq.s32.totalorder %s53, 0
    %s56 = sadd.s32 %s55, 1
    %s57 = scalar_select %p54, %s55, %s56
    %p60 = pneg %p54
    %p61 = scmp.eq.s32.totalorder %s19, 1
    %p62 = por %p60, %p61
    %p63 = scmp.ne.s32.totalorder %s55, %s58
    %p64 = scmp.eq.s32.totalorder %s19, 0
    %p65 = por %p63, %p64
    %p66 = scmp.ne.s32.totalorder %s55, %s58
    %p67 = scmp.eq.s32.totalorder %s24, 1
    %p68 = por %p66, %p67
    %p69 = scmp.ne.s32.totalorder %s58, %s59
    %p70 = scmp.eq.s32.totalorder %s24, 0
    %p71 = por %p69, %p70
    %p72 = scmp.ne.s32.totalorder %s58, %s59
    %p73 = scmp.eq.s32.totalorder %s25, 1
    %p74 = por %p72, %p73
    %p76 = scmp.ne.s32.totalorder %s59, %s75
    %p77 = scmp.eq.s32.totalorder %s25, 0
    %p78 = por %p76, %p77
    %s79 = ssub.s32 %s19, %s26
    %p80 = scmp.eq.s32.totalorder %s79, 0
    %s82 = sadd.s32 %s81, 1
    %s83 = scalar_select %p80, %s81, %s82
    %p86 = pneg %p80
    %p87 = scmp.eq.s32.totalorder %s19, 1
    %p88 = por %p86, %p87
    %p89 = scmp.ne.s32.totalorder %s81, %s84
    %p90 = scmp.eq.s32.totalorder %s19, 0
    %p91 = por %p89, %p90
    %p92 = scmp.ne.s32.totalorder %s81, %s84
    %p93 = scmp.eq.s32.totalorder %s24, 1
    %p94 = por %p92, %p93
    %p95 = scmp.ne.s32.totalorder %s84, %s85
    %p96 = scmp.eq.s32.totalorder %s24, 0
    %p97 = por %p95, %p96
    %p98 = scmp.ne.s32.totalorder %s84, %s85
    %p99 = scmp.eq.s32.totalorder %s25, 1
    %p100 = por %p98, %p99
    %p102 = scmp.ne.s32.totalorder %s85, %s101
    %p103 = scmp.eq.s32.totalorder %s25, 0
    %p104 = por %p102, %p103
    %s106 = sadd.s32 %s105, 1
    %p109 = scmp.eq.s32.totalorder %s19, 1
    %p110 = scmp.ne.s32.totalorder %s105, %s107
    %p111 = scmp.eq.s32.totalorder %s19, 0
    %p112 = por %p110, %p111
    %p113 = scmp.ne.s32.totalorder %s105, %s107
    %p114 = scmp.eq.s32.totalorder %s24, 1
    %p115 = por %p113, %p114
    %p116 = scmp.ne.s32.totalorder %s107, %s108
    %p117 = scmp.eq.s32.totalorder %s24, 0
    %p118 = por %p116, %p117
    %p119 = scmp.ne.s32.totalorder %s107, %s108
    %p120 = scmp.eq.s32.totalorder %s25, 1
    %p121 = por %p119, %p120
    %p123 = scmp.ne.s32.totalorder %s108, %s122
    %p124 = scmp.eq.s32.totalorder %s25, 0
    %p125 = por %p123, %p124
    %s127 = sadd.s32 %s126, 1
    %p130 = scmp.eq.s32.totalorder %s19, 1
    %p131 = scmp.ne.s32.totalorder %s126, %s128
    %p132 = scmp.eq.s32.totalorder %s19, 0
    %p133 = por %p131, %p132
    %p134 = scmp.ne.s32.totalorder %s126, %s128
    %p135 = scmp.eq.s32.totalorder %s24, 1
    %p136 = por %p134, %p135
    %p137 = scmp.ne.s32.totalorder %s128, %s129
    %p138 = scmp.eq.s32.totalorder %s24, 0
    %p139 = por %p137, %p138
    %p140 = scmp.ne.s32.totalorder %s128, %s129
    %p141 = scmp.eq.s32.totalorder %s25, 1
    %p142 = por %p140, %p141
    %p144 = scmp.ne.s32.totalorder %s129, %s143
    %p145 = scmp.eq.s32.totalorder %s25, 0
    %p146 = por %p144, %p145
    %s148 = sadd.s32 %s147, 1
    %p151 = scmp.eq.s32.totalorder %s19, 1
    %p152 = scmp.ne.s32.totalorder %s147, %s149
    %p153 = scmp.eq.s32.totalorder %s19, 0
    %p154 = por %p152, %p153
    %p155 = scmp.ne.s32.totalorder %s147, %s149
    %p156 = scmp.eq.s32.totalorder %s24, 1
    %p157 = por %p155, %p156
    %p158 = scmp.ne.s32.totalorder %s149, %s150
    %p159 = scmp.eq.s32.totalorder %s24, 0
    %p160 = por %p158, %p159
    %p161 = scmp.ne.s32.totalorder %s149, %s150
    %p162 = scmp.eq.s32.totalorder %s25, 1
    %p163 = por %p161, %p162
    %p165 = scmp.ne.s32.totalorder %s150, %s164
    %p166 = scmp.eq.s32.totalorder %s25, 0
    %p167 = por %p165, %p166
    %s169 = sadd.s32 %s168, 1
    %p172 = scmp.eq.s32.totalorder %s19, 1
    %p173 = scmp.ne.s32.totalorder %s168, %s170
    %p174 = scmp.eq.s32.totalorder %s19, 0
    %p175 = por %p173, %p174
    %p176 = scmp.ne.s32.totalorder %s168, %s170
    %p177 = scmp.eq.s32.totalorder %s24, 1
    %p178 = por %p176, %p177
    %p179 = scmp.ne.s32.totalorder %s170, %s171
    %p180 = scmp.eq.s32.totalorder %s24, 0
    %p181 = por %p179, %p180
    %p182 = scmp.ne.s32.totalorder %s170, %s171
    %p183 = scmp.eq.s32.totalorder %s25, 1
    %p184 = por %p182, %p183
    %p186 = scmp.ne.s32.totalorder %s171, %s185
    %p187 = scmp.eq.s32.totalorder %s25, 0
    %p188 = por %p186, %p187
    %s190 = sadd.s32 %s189, 1
    %p193 = scmp.eq.s32.totalorder %s19, 1
    %p194 = scmp.ne.s32.totalorder %s189, %s191
    %p195 = scmp.eq.s32.totalorder %s19, 0
    %p196 = por %p194, %p195
    %p197 = scmp.ne.s32.totalorder %s189, %s191
    %p198 = scmp.eq.s32.totalorder %s24, 1
    %p199 = por %p197, %p198
    %p200 = scmp.ne.s32.totalorder %s191, %s192
    %p201 = scmp.eq.s32.totalorder %s24, 0
    %p202 = por %p200, %p201
    %p203 = scmp.ne.s32.totalorder %s191, %s192
    %p204 = scmp.eq.s32.totalorder %s25, 1
    %p205 = por %p203, %p204
    %p207 = scmp.ne.s32.totalorder %s192, %s206
    %p208 = scmp.eq.s32.totalorder %s25, 0
    %p209 = por %p207, %p208
    %s211 = sadd.s32 %s210, 1
    %p214 = scmp.eq.s32.totalorder %s19, 1
    %p215 = scmp.ne.s32.totalorder %s210, %s212
    %p216 = scmp.eq.s32.totalorder %s19, 0
    %p217 = por %p215, %p216
    %p218 = scmp.ne.s32.totalorder %s210, %s212
    %p219 = scmp.eq.s32.totalorder %s24, 1
    %p220 = por %p218, %p219
    %p221 = scmp.ne.s32.totalorder %s212, %s213
    %p222 = scmp.eq.s32.totalorder %s24, 0
    %p223 = por %p221, %p222
    %p224 = scmp.ne.s32.totalorder %s212, %s213
    %p225 = scmp.eq.s32.totalorder %s25, 1
    %p226 = por %p224, %p225
    %p228 = scmp.ne.s32.totalorder %s213, %s227
    %p229 = scmp.eq.s32.totalorder %s25, 0
    %p230 = por %p228, %p229
    %s232 = sadd.s32 %s231, 1
    %p235 = scmp.eq.s32.totalorder %s19, 1
    %p236 = scmp.ne.s32.totalorder %s231, %s233
    %p237 = scmp.eq.s32.totalorder %s19, 0
    %p238 = por %p236, %p237
    %p239 = scmp.ne.s32.totalorder %s231, %s233
    %p240 = scmp.eq.s32.totalorder %s24, 1
    %p241 = por %p239, %p240
    %p242 = scmp.ne.s32.totalorder %s233, %s234
    %p243 = scmp.eq.s32.totalorder %s24, 0
    %p244 = por %p242, %p243
    %p245 = scmp.ne.s32.totalorder %s233, %s234
    %p246 = scmp.eq.s32.totalorder %s25, 1
    %p247 = por %p245, %p246
    %p249 = scmp.ne.s32.totalorder %s234, %s248
    %p250 = scmp.eq.s32.totalorder %s25, 0
    %p251 = por %p249, %p250
    %s253 = sadd.s32 %s252, 1
    %p256 = scmp.eq.s32.totalorder %s19, 1
    %p257 = scmp.ne.s32.totalorder %s252, %s254
    %p258 = scmp.eq.s32.totalorder %s19, 0
    %p259 = por %p257, %p258
    %p260 = scmp.ne.s32.totalorder %s252, %s254
    %p261 = scmp.eq.s32.totalorder %s24, 1
    %p262 = por %p260, %p261
    %p263 = scmp.ne.s32.totalorder %s254, %s255
    %p264 = scmp.eq.s32.totalorder %s24, 0
    %p265 = por %p263, %p264
    %p266 = scmp.ne.s32.totalorder %s254, %s255
    %p267 = scmp.eq.s32.totalorder %s25, 1
    %p268 = por %p266, %p267
    %p270 = scmp.ne.s32.totalorder %s255, %s269
    %p271 = scmp.eq.s32.totalorder %s25, 0
    %p272 = por %p270, %p271
    %s273 = ssub.s32 %s19, %s26
    %p274 = scmp.eq.s32.totalorder %s273, 0
    %s276 = sadd.s32 %s275, 1
    %s277 = scalar_select %p274, %s275, %s276
    %p280 = pneg %p274
    %p281 = scmp.eq.s32.totalorder %s19, 1
    %p282 = por %p280, %p281
    %p283 = scmp.ne.s32.totalorder %s275, %s278
    %p284 = scmp.eq.s32.totalorder %s19, 0
    %p285 = por %p283, %p284
    %p286 = scmp.ne.s32.totalorder %s275, %s278
    %p287 = scmp.eq.s32.totalorder %s24, 1
    %p288 = por %p286, %p287
    %p289 = scmp.ne.s32.totalorder %s278, %s279
    %p290 = scmp.eq.s32.totalorder %s24, 0
    %p291 = por %p289, %p290
    %p292 = scmp.ne.s32.totalorder %s278, %s279
    %p293 = scmp.eq.s32.totalorder %s25, 1
    %p294 = por %p292, %p293
    %p296 = scmp.ne.s32.totalorder %s279, %s295
    %p297 = scmp.eq.s32.totalorder %s25, 0
    %p298 = por %p296, %p297
    %p299 = scmp.le.s32.totalorder 1, %s19
    %p300 = scmp.lt.s32.totalorder %s19, 3
    %p301 = pnand %p299, %p300
    %p302 = pneg %p301
    // Predicated region
    $region9: #{pgnn_forward.5} parent=5 // pred_check
      _
    $region10: #{pgnn_forward.5} parent=5 // pred_check_branch
      %304 = sbr.rel (%p301) target = $region12
    $region11: #{pgnn_forward.5} parent=5 // pred_region
      %s305 = ssub.s32 %s19, 1
      // Predicated region
      $region13: #{pgnn_forward.5} parent=11 // pred_check
        %p306 = pneg %p118
      $region14: #{pgnn_forward.5} parent=11 // pred_check_branch
        %308 = sbr.rel (%p306) target = $region16
      $region15: #{pgnn_forward.5} parent=11 // pred_region
        _
      $region16: #{pgnn_forward.5} parent=11 // pred_fallthru
        _
      // Predicated region
      $region17: #{pgnn_forward.5} parent=11 // pred_check
        %p309 = pneg %p139
      $region18: #{pgnn_forward.5} parent=11 // pred_check_branch
        %311 = sbr.rel (%p309) target = $region20
      $region19: #{pgnn_forward.5} parent=11 // pred_region
        _
      $region20: #{pgnn_forward.5} parent=11 // pred_fallthru
        _
      // Predicated region
      $region21: #{pgnn_forward.5} parent=11 // pred_check
        %p312 = pneg %p160
      $region22: #{pgnn_forward.5} parent=11 // pred_check_branch
        %314 = sbr.rel (%p312) target = $region24
      $region23: #{pgnn_forward.5} parent=11 // pred_region
        _
      $region24: #{pgnn_forward.5} parent=11 // pred_fallthru
        _
      // Predicated region
      $region25: #{pgnn_forward.5} parent=11 // pred_check
        %p315 = pneg %p181
      $region26: #{pgnn_forward.5} parent=11 // pred_check_branch
        %317 = sbr.rel (%p315) target = $region28
      $region27: #{pgnn_forward.5} parent=11 // pred_region
        _
      $region28: #{pgnn_forward.5} parent=11 // pred_fallthru
        _
      // Predicated region
      $region29: #{pgnn_forward.5} parent=11 // pred_check
        %p318 = pneg %p202
      $region30: #{pgnn_forward.5} parent=11 // pred_check_branch
        %320 = sbr.rel (%p318) target = $region32
      $region31: #{pgnn_forward.5} parent=11 // pred_region
        _
      $region32: #{pgnn_forward.5} parent=11 // pred_fallthru
        _
      // Predicated region
      $region33: #{pgnn_forward.5} parent=11 // pred_check
        %p321 = pneg %p223
      $region34: #{pgnn_forward.5} parent=11 // pred_check_branch
        %323 = sbr.rel (%p321) target = $region36
      $region35: #{pgnn_forward.5} parent=11 // pred_region
        _
      $region36: #{pgnn_forward.5} parent=11 // pred_fallthru
        _
      // Predicated region
      $region37: #{pgnn_forward.5} parent=11 // pred_check
        %p324 = pneg %p244
      $region38: #{pgnn_forward.5} parent=11 // pred_check_branch
        %326 = sbr.rel (%p324) target = $region40
      $region39: #{pgnn_forward.5} parent=11 // pred_region
        _
      $region40: #{pgnn_forward.5} parent=11 // pred_fallthru
        _
      // Predicated region
      $region41: #{pgnn_forward.5} parent=11 // pred_check
        %p327 = pneg %p265
      $region42: #{pgnn_forward.5} parent=11 // pred_check_branch
        %329 = sbr.rel (%p327) target = $region44
      $region43: #{pgnn_forward.5} parent=11 // pred_region
        _
      $region44: #{pgnn_forward.5} parent=11 // pred_fallthru
        _
    $region12: #{pgnn_forward.5} parent=5 // pred_fallthru
      _
    %p330 = scmp.lt.s32.totalorder %s19, 2
    // Predicated region
    $region45: #{pgnn_forward.5} parent=5 // pred_check
      %p331 = pneg %p330
    $region46: #{pgnn_forward.5} parent=5 // pred_check_branch
      %333 = sbr.rel (%p331) target = $region48
    $region47: #{pgnn_forward.5} parent=5 // pred_region
      // Predicated region
      $region49: #{pgnn_forward.5} parent=47 // pred_check
        %p334 = pneg %p39
      $region50: #{pgnn_forward.5} parent=47 // pred_check_branch
        %336 = sbr.rel (%p334) target = $region52
      $region51: #{pgnn_forward.5} parent=47 // pred_region
        %p337 = scmp.lt.s32.totalorder %s19, 1
        %s338 = scalar_select %p337, %s19, 1
        %s339 = smul.addr %s338, 8
        %s340 = scalar_lea.vmem %s0, %s339
      $region52: #{pgnn_forward.5} parent=47 // pred_fallthru
        _
      // Predicated region
      $region53: #{pgnn_forward.5} parent=47 // pred_check
        %p341 = pneg %p65
      $region54: #{pgnn_forward.5} parent=47 // pred_check_branch
        %343 = sbr.rel (%p341) target = $region56
      $region55: #{pgnn_forward.5} parent=47 // pred_region
        %s344 = smul.u32 8, %s19
        %p345 = scmp.lt.s32.totalorder %s344, 15
        %s346 = scalar_select %p345, %s344, 15
        %s347 = smul.addr %s346, 8
        %s348 = scalar_lea.vmem %s1, %s347
        %s349 = smul.u32 8, %s19
      $region56: #{pgnn_forward.5} parent=47 // pred_fallthru
        _
      // Predicated region
      $region57: #{pgnn_forward.5} parent=47 // pred_check
        %p350 = pneg %p91
      $region58: #{pgnn_forward.5} parent=47 // pred_check_branch
        %352 = sbr.rel (%p350) target = $region60
      $region59: #{pgnn_forward.5} parent=47 // pred_region
        %p353 = scmp.lt.s32.totalorder %s19, 1
        %s354 = scalar_select %p353, %s19, 1
        %s355 = smul.addr %s354, 8
        %s356 = scalar_lea.vmem %s2, %s355
      $region60: #{pgnn_forward.5} parent=47 // pred_fallthru
        _
    $region48: #{pgnn_forward.5} parent=5 // pred_fallthru
      _
    %p357 = scmp.le.s32.totalorder 1, %s19
    %p358 = scmp.lt.s32.totalorder %s19, 3
    %p359 = pnand %p357, %p358
    %p360 = pneg %p359
    // Predicated region
    $region61: #{pgnn_forward.5} parent=5 // pred_check
      _
    $region62: #{pgnn_forward.5} parent=5 // pred_check_branch
      %362 = sbr.rel (%p359) target = $region64
    $region63: #{pgnn_forward.5} parent=5 // pred_region
      %s363 = ssub.s32 %s19, 1
      %p364 = scmp.lt.s32.totalorder %s24, 1
      %s365 = scalar_select %p364, %s24, 1
      %s366 = smul.addr %s365, 8
      %s367 = scalar_lea.vmem %s0, %s366
      %p368 = pneg %p45
      %p369 = pneg %p42
      %s370 = smul.u32 8, %s24
      %p371 = scmp.lt.s32.totalorder %s370, 15
      %s372 = scalar_select %p371, %s370, 15
      %s373 = smul.addr %s372, 8
      %s374 = scalar_lea.vmem %s1, %s373
      %p375 = pneg %p71
      %p376 = pneg %p68
      %p377 = scmp.lt.s32.totalorder %s24, 1
      %s378 = scalar_select %p377, %s24, 1
      %s379 = smul.addr %s378, 8
      %s380 = scalar_lea.vmem %s2, %s379
      %p381 = pneg %p97
      %p382 = pneg %p94
      %p383 = pneg %p118
      %p384 = pneg %p115
      %p385 = pneg %p139
      %p386 = pneg %p136
      %p387 = pneg %p160
      %p388 = pneg %p157
      %p389 = pneg %p181
      %p390 = pneg %p178
      %p391 = pneg %p202
      %p392 = pneg %p199
      %p393 = pneg %p223
      %p394 = pneg %p220
      %p395 = pneg %p244
      %p396 = pneg %p241
      %p397 = pneg %p265
      %p398 = pneg %p262
      %p399 = pneg %p291
      %p400 = pneg %p288
      %p401 = scmp.lt.s32.totalorder %s24, 1
      %s402 = scalar_select %p401, %s24, 1
      %s403 = smul.addr %s402, 8
      %s404 = scalar_lea.vmem %s11, %s403
      %p405 = scmp.lt.s32.totalorder %s24, 1
      %s406 = scalar_select %p405, %s24, 1
      %s407 = smul.addr %s406, 8
      %s408 = scalar_lea.vmem %s0, %s407
      %s409 = smul.u32 8, %s24
      %p410 = scmp.lt.s32.totalorder %s409, 15
      %s411 = scalar_select %p410, %s409, 15
      %s412 = smul.addr %s411, 8
      %s413 = scalar_lea.vmem %s1, %s412
      %s414 = smul.u32 8, %s24
      %p415 = scmp.lt.s32.totalorder %s24, 1
      %s416 = scalar_select %p415, %s24, 1
      %s417 = smul.addr %s416, 8
      %s418 = scalar_lea.vmem %s2, %s417
      %p419 = scmp.lt.s32.totalorder %s24, 1
      %s420 = scalar_select %p419, %s24, 1
      %s421 = smul.addr %s420, 8
      %s422 = scalar_lea.vmem %s11, %s421
      %v423 = vld [vmem:[%s413] sm:$0xff]
      %v424 = vld [vmem:[%s413 + $0x8] sm:$0xff]
      %v425 = vld [vmem:[%s413 + $0x10] sm:$0xff]
      %v426 = vld [vmem:[%s413 + $0x18] sm:$0xff]
      %v427 = vld [vmem:[%s413 + $0x20] sm:$0xff]
      %v428 = vld [vmem:[%s413 + $0x28] sm:$0xff]
      %v429 = vld [vmem:[%s413 + $0x30] sm:$0xff]
      %v430 = vld [vmem:[%s413 + $0x38] sm:$0xff]
      %v431 = vld [vmem:[%s408] sm:$0xff]
      %v432 = vld [vmem:[%s418] sm:$0xff]
      %v433 = vld [vmem:[%s3] sm:$0xff]
      %v434 = vld [vmem:[%s3 + $0x8] sm:$0xff]
      %v435 = vld [vmem:[%s4] sm:$0x1]
      %v436 = vld [vmem:[%s5] sm:$0x1]
      %v437 = vld [vmem:[%s6] sm:$0x1]
      %v438 = vld [vmem:[%s7] sm:$0x1]
      %s439 = sld [smem:[#allocation2]]
      %v440 = vlaneseq
      %v441 = vshrl.u32 %v440, 7
      %v442 = vsub.s32 0, %v441
      %v443 = vrot.slane %v432, %v442
      %445 = vbcast.lane.b32.xlu0 %v443, 256
      %v446 = vpop.permute.xlu0 %445
      %v447 = vlaneseq
      %v448 = vshrl.u32 %v447, 7
      %v449 = vsub.s32 1, %v448
      %v450 = vrot.slane %v432, %v449
      %452 = vbcast.lane.b32.xlu0 %v450, 256
      %v453 = vpop.permute.xlu0 %452
      %v454 = vlaneseq
      %v455 = vshrl.u32 %v454, 7
      %v456 = vsub.s32 2, %v455
      %v457 = vrot.slane %v432, %v456
      %459 = vbcast.lane.b32.xlu0 %v457, 256
      %v460 = vpop.permute.xlu0 %459
      %v461 = vlaneseq
      %v462 = vshrl.u32 %v461, 7
      %v463 = vsub.s32 3, %v462
      %v464 = vrot.slane %v432, %v463
      %466 = vbcast.lane.b32.xlu0 %v464, 256
      %v467 = vpop.permute.xlu0 %466
      %v468 = vlaneseq
      %v469 = vshrl.u32 %v468, 7
      %v470 = vsub.s32 4, %v469
      %v471 = vrot.slane %v432, %v470
      %473 = vbcast.lane.b32.xlu0 %v471, 256
      %v474 = vpop.permute.xlu0 %473
      %v475 = vlaneseq
      %v476 = vshrl.u32 %v475, 7
      %v477 = vsub.s32 5, %v476
      %v478 = vrot.slane %v432, %v477
      %480 = vbcast.lane.b32.xlu0 %v478, 256
      %v481 = vpop.permute.xlu0 %480
      %v482 = vlaneseq
      %v483 = vshrl.u32 %v482, 7
      %v484 = vsub.s32 6, %v483
      %v485 = vrot.slane %v432, %v484
      %487 = vbcast.lane.b32.xlu0 %v485, 256
      %v488 = vpop.permute.xlu0 %487
      %v489 = vlaneseq
      %v490 = vshrl.u32 %v489, 7
      %v491 = vsub.s32 7, %v490
      %v492 = vrot.slane %v432, %v491
      %494 = vbcast.lane.b32.xlu0 %v492, 256
      %v495 = vpop.permute.xlu0 %494
      %v497 = vlaneseq
      %v498 = vshrl.u32 %v497, 7
      %v499 = vsub.s32 0, %v498
      %v500 = vrot.slane %v436, %v499
      %v502 = vmul.f32 %v446, %v500
      %v503 = vmul.f32 %v453, %v500
      %v504 = vmul.f32 %v460, %v500
      %v505 = vmul.f32 %v467, %v500
      %v506 = vmul.f32 %v474, %v500
      %v507 = vmul.f32 %v481, %v500
      %v508 = vmul.f32 %v488, %v500
      %v509 = vmul.f32 %v495, %v500
      %v511 = vlaneseq
      %v512 = vshrl.u32 %v511, 7
      %v513 = vsub.s32 0, %v512
      %v514 = vrot.slane %v437, %v513
      %v516 = vadd.f32 %v502, %v514
      %v517 = vadd.f32 %v503, %v514
      %v518 = vadd.f32 %v504, %v514
      %v519 = vadd.f32 %v505, %v514
      %v520 = vadd.f32 %v506, %v514
      %v521 = vadd.f32 %v507, %v514
      %v522 = vadd.f32 %v508, %v514
      %v523 = vadd.f32 %v509, %v514
      %v524 = vmax.f32 %v516, 0.0
      %v525 = vmax.f32 %v517, 0.0
      %v526 = vmax.f32 %v518, 0.0
      %v527 = vmax.f32 %v519, 0.0
      %v528 = vmax.f32 %v520, 0.0
      %v529 = vmax.f32 %v521, 0.0
      %v530 = vmax.f32 %v522, 0.0
      %v531 = vmax.f32 %v523, 0.0
      %v533 = vlaneseq
      %v534 = vshrl.u32 %v533, 7
      %v535 = vsub.s32 0, %v534
      %v536 = vrot.slane %v438, %v535
      %v538 = vmul.f32 %v524, %v536
      %v539 = vmul.f32 %v525, %v536
      %v540 = vmul.f32 %v526, %v536
      %v541 = vmul.f32 %v527, %v536
      %v542 = vmul.f32 %v528, %v536
      %v543 = vmul.f32 %v529, %v536
      %v544 = vmul.f32 %v530, %v536
      %v545 = vmul.f32 %v531, %v536
      %vm546 = vcmask 64512
      %v547 = vsel %vm546, %v538, 0.0
      %548 = vadd.xlane.f32.xlu0 %v547
      %v549 = vpop.xlane.xlu0 %548
      %v550 = vsel %vm546, %v539, 0.0
      %551 = vadd.xlane.f32.xlu0 %v550
      %v552 = vpop.xlane.xlu0 %551
      %v553 = vsel %vm546, %v540, 0.0
      %554 = vadd.xlane.f32.xlu0 %v553
      %v555 = vpop.xlane.xlu0 %554
      %v556 = vsel %vm546, %v541, 0.0
      %557 = vadd.xlane.f32.xlu0 %v556
      %v558 = vpop.xlane.xlu0 %557
      %v559 = vsel %vm546, %v542, 0.0
      %560 = vadd.xlane.f32.xlu0 %v559
      %v561 = vpop.xlane.xlu0 %560
      %v562 = vsel %vm546, %v543, 0.0
      %563 = vadd.xlane.f32.xlu0 %v562
      %v564 = vpop.xlane.xlu0 %563
      %v565 = vsel %vm546, %v544, 0.0
      %566 = vadd.xlane.f32.xlu0 %v565
      %v567 = vpop.xlane.xlu0 %566
      %v568 = vsel %vm546, %v545, 0.0
      %569 = vadd.xlane.f32.xlu0 %v568
      %v570 = vpop.xlane.xlu0 %569
      %v571 = vstv %s439
      %v572 = vadd.f32 %v549, %v571
      %v573 = vadd.f32 %v552, %v571
      %v574 = vadd.f32 %v555, %v571
      %v575 = vadd.f32 %v558, %v571
      %v576 = vadd.f32 %v561, %v571
      %v577 = vadd.f32 %v564, %v571
      %v578 = vadd.f32 %v567, %v571
      %v579 = vadd.f32 %v570, %v571
      %v581 = vlaneseq
      %v582 = vshrl.u32 %v581, 7
      %v583 = vsub.s32 0, %v582
      %v584 = vrot.slane %v435, %v583
      %vm586 = vcmask 130048
      %v588 = vsel %vm586, %v431, 0
      %590 = vmatprep.subr.mxu0 0.0
      %591 = vmatpush1.msra.mxu0 0.0
      %592 = vmatprep.subr.mxu0 0.0
      %593 = vmatpush1.msra.mxu0 0.0
      %594 = vmatprep.subr.mxu0 0.0
      %595 = vmatpush1.msra.mxu0 0.0
      %596 = vmatprep.subr.mxu0 0.0
      %597 = vmatpush1.msra.mxu0 0.0
      %598 = vmatprep.subr.mxu0 0.0
      %599 = vmatpush1.msra.mxu0 0.0
      %600 = vmatprep.subr.mxu0 0.0
      %601 = vmatpush1.msra.mxu0 0.0
      %602 = vmatprep.subr.mxu0 0.0
      %603 = vmatpush1.msra.mxu0 0.0
      %604 = vmatprep.subr.mxu0 0.0
      %605 = vmatpush1.msra.mxu0 0.0
      %606 = vmatprep.subr.mxu0 0.0
      %607 = vmatpush1.msra.mxu0 0.0
      %608 = vmatprep.subr.mxu0 0.0
      %609 = vmatpush1.msra.mxu0 0.0
      %610 = vmatprep.subr.mxu0 0.0
      %611 = vmatpush1.msra.mxu0 0.0
      %612 = vmatprep.subr.mxu0 0.0
      %613 = vmatpush1.msra.mxu0 0.0
      %614 = vmatprep.subr.mxu0 0.0
      %615 = vmatpush1.msra.mxu0 0.0
      %616 = vmatprep.subr.mxu0 0.0
      %617 = vmatpush1.msra.mxu0 0.0
      %618 = vmatprep.subr.mxu0 0.0
      %619 = vmatpush1.msra.mxu0 %v434
      %620 = vmatprep.subr.mxu0 0.0
      %621 = vmatpush1.msra.mxu0 %v433
      %622 = vmatprep.subr.mxu0 0.0
      %623 = vmatpush2.msra.mxu0 0.0
      %624 = vmatprep.subr.mxu0 0.0
      %625 = vmatpush2.msra.mxu0 0.0
      %626 = vmatprep.subr.mxu0 0.0
      %627 = vmatpush2.msra.mxu0 0.0
      %628 = vmatprep.subr.mxu0 0.0
      %629 = vmatpush2.msra.mxu0 0.0
      %630 = vmatprep.subr.mxu0 0.0
      %631 = vmatpush2.msra.mxu0 0.0
      %632 = vmatprep.subr.mxu0 0.0
      %633 = vmatpush2.msra.mxu0 0.0
      %634 = vmatprep.subr.mxu0 0.0
      %635 = vmatpush2.msra.mxu0 0.0
      %636 = vmatprep.subr.mxu0 0.0
      %637 = vmatpush2.msra.mxu0 0.0
      %638 = vmatprep.subr.mxu0 0.0
      %639 = vmatpush2.msra.mxu0 0.0
      %640 = vmatprep.subr.mxu0 0.0
      %641 = vmatpush2.msra.mxu0 0.0
      %642 = vmatprep.subr.mxu0 0.0
      %643 = vmatpush2.msra.mxu0 0.0
      %644 = vmatprep.subr.mxu0 0.0
      %645 = vmatpush2.msra.mxu0 0.0
      %646 = vmatprep.subr.mxu0 0.0
      %647 = vmatpush2.msra.mxu0 0.0
      %648 = vmatprep.subr.mxu0 0.0
      %649 = vmatpush2.msra.mxu0 0.0
      %650 = vmatprep.subr.mxu0 0.0
      %651 = vmatpush2.msra.mxu0 0.0
      %652 = vmatprep.subr.mxu0 0.0
      %653 = vmatpush2.msra.mxu0 0.0
      %654 = vmatprep.mubr.f32.mxu0 0.0
      %655 = vmatmul.mubr.f32.gmra.mxu0 %v588
      %v656 = vpop.f32.mrf.mxu0
      %v657 = vadd.f32 %v584, %v656
      %v658 = vpop.f32.mrf.mxu0
      %659 = vdwg.mxu0
      %v660 = vmul.f32 %v572, %v423
      %v661 = vmul.f32 %v573, %v424
      %v662 = vmul.f32 %v574, %v425
      %v663 = vmul.f32 %v575, %v426
      %v664 = vmul.f32 %v576, %v427
      %v665 = vmul.f32 %v577, %v428
      %v666 = vmul.f32 %v578, %v429
      %v667 = vmul.f32 %v579, %v430
      %v669 = vcombine.high %v657, %v657
      %v671 = vunpack.c.l.s4 1966171168
      %v672 = vunpack.c.0.s8 %v671
      %v673 = vlaneseq
      %v674 = vshrl.u32 %v673, 7
      %v675 = vsub.s32 %v672, %v674
      %v676 = vrot.slane %v657, %v675
      %v678 = vunpack.c.l.s4 1966171168
      %v679 = vunpack.c.0.s8 %v678
      %v680 = vlaneseq
      %v681 = vshrl.u32 %v680, 7
      %v682 = vsub.s32 %v679, %v681
      %v683 = vrot.slane %v669, %v682
      %v684 = vcombine.high %v676, %v676
      %v685 = vcombine.high %v683, %v683
      %v687 = vunpack.c.l.s4 1966171168
      %v688 = vunpack.c.0.s8 %v687
      %v689 = vlaneseq
      %v690 = vshrl.u32 %v689, 7
      %v691 = vsub.s32 %v688, %v690
      %v692 = vrot.slane %v676, %v691
      %v694 = vunpack.c.l.s4 1966171168
      %v695 = vunpack.c.0.s8 %v694
      %v696 = vlaneseq
      %v697 = vshrl.u32 %v696, 7
      %v698 = vsub.s32 %v695, %v697
      %v699 = vrot.slane %v683, %v698
      %v701 = vunpack.c.l.s4 1966171168
      %v702 = vunpack.c.0.s8 %v701
      %v703 = vlaneseq
      %v704 = vshrl.u32 %v703, 7
      %v705 = vsub.s32 %v702, %v704
      %v706 = vrot.slane %v684, %v705
      %v708 = vunpack.c.l.s4 1966171168
      %v709 = vunpack.c.0.s8 %v708
      %v710 = vlaneseq
      %v711 = vshrl.u32 %v710, 7
      %v712 = vsub.s32 %v709, %v711
      %v713 = vrot.slane %v685, %v712
      %v714 = vcombine.high %v692, %v692
      %v715 = vcombine.high %v699, %v699
      %v716 = vcombine.high %v706, %v706
      %v717 = vcombine.high %v713, %v713
      %v718 = vlaneseq
      %v719 = vshrl.u32 %v718, 7
      %v720 = vsub.s32 0, %v719
      %v721 = vrot.slane %v692, %v720
      %v722 = vlaneseq
      %v723 = vshrl.u32 %v722, 7
      %v724 = vsub.s32 0, %v723
      %v725 = vrot.slane %v706, %v724
      %v726 = vlaneseq
      %v727 = vshrl.u32 %v726, 7
      %v728 = vsub.s32 0, %v727
      %v729 = vrot.slane %v714, %v728
      %v730 = vlaneseq
      %v731 = vshrl.u32 %v730, 7
      %v732 = vsub.s32 0, %v731
      %v733 = vrot.slane %v716, %v732
      %v734 = vlaneseq
      %v735 = vshrl.u32 %v734, 7
      %v736 = vsub.s32 0, %v735
      %v737 = vrot.slane %v699, %v736
      %v738 = vlaneseq
      %v739 = vshrl.u32 %v738, 7
      %v740 = vsub.s32 0, %v739
      %v741 = vrot.slane %v713, %v740
      %v742 = vlaneseq
      %v743 = vshrl.u32 %v742, 7
      %v744 = vsub.s32 0, %v743
      %v745 = vrot.slane %v715, %v744
      %v746 = vlaneseq
      %v747 = vshrl.u32 %v746, 7
      %v748 = vsub.s32 0, %v747
      %v749 = vrot.slane %v717, %v748
      %v758 = vadd.f32 %v660, %v721
      %v759 = vadd.f32 %v661, %v725
      %v760 = vadd.f32 %v662, %v729
      %v761 = vadd.f32 %v663, %v733
      %v762 = vadd.f32 %v664, %v737
      %v763 = vadd.f32 %v665, %v741
      %v764 = vadd.f32 %v666, %v745
      %v765 = vadd.f32 %v667, %v749
      %v766 = vmax.f32 %v758, 0.0
      %v767 = vmax.f32 %v759, 0.0
      %v768 = vmax.f32 %v760, 0.0
      %v769 = vmax.f32 %v761, 0.0
      %v770 = vmax.f32 %v762, 0.0
      %v771 = vmax.f32 %v763, 0.0
      %v772 = vmax.f32 %v764, 0.0
      %v773 = vmax.f32 %v765, 0.0
      %v774 = vld [vmem:[%s9] sm:$0x1]
      %v776 = vlaneseq
      %v777 = vshrl.u32 %v776, 7
      %v778 = vsub.s32 0, %v777
      %v779 = vrot.slane %v774, %v778
      %v781 = vmul.f32 %v766, %v779
      %v782 = vmul.f32 %v767, %v779
      %v783 = vmul.f32 %v768, %v779
      %v784 = vmul.f32 %v769, %v779
      %v785 = vmul.f32 %v770, %v779
      %v786 = vmul.f32 %v771, %v779
      %v787 = vmul.f32 %v772, %v779
      %v788 = vmul.f32 %v773, %v779
      %v789 = vsel %vm546, %v781, 0.0
      %790 = vadd.xlane.f32.xlu0 %v789
      %v791 = vpop.xlane.xlu0 %790
      %v792 = vsel %vm546, %v782, 0.0
      %793 = vadd.xlane.f32.xlu0 %v792
      %v794 = vpop.xlane.xlu0 %793
      %v795 = vsel %vm546, %v783, 0.0
      %796 = vadd.xlane.f32.xlu0 %v795
      %v797 = vpop.xlane.xlu0 %796
      %v798 = vsel %vm546, %v784, 0.0
      %799 = vadd.xlane.f32.xlu0 %v798
      %v800 = vpop.xlane.xlu0 %799
      %v801 = vsel %vm546, %v785, 0.0
      %802 = vadd.xlane.f32.xlu0 %v801
      %v803 = vpop.xlane.xlu0 %802
      %v804 = vsel %vm546, %v786, 0.0
      %805 = vadd.xlane.f32.xlu0 %v804
      %v806 = vpop.xlane.xlu0 %805
      %v807 = vsel %vm546, %v787, 0.0
      %808 = vadd.xlane.f32.xlu0 %v807
      %v809 = vpop.xlane.xlu0 %808
      %v810 = vsel %vm546, %v788, 0.0
      %811 = vadd.xlane.f32.xlu0 %v810
      %v812 = vpop.xlane.xlu0 %811
      %s813 = sld [smem:[#allocation3]]
      %v814 = vstv %s813
      %v815 = vadd.f32 %v791, %v814
      %v816 = vadd.f32 %v794, %v814
      %v817 = vadd.f32 %v797, %v814
      %v818 = vadd.f32 %v800, %v814
      %v819 = vadd.f32 %v803, %v814
      %v820 = vadd.f32 %v806, %v814
      %v821 = vadd.f32 %v809, %v814
      %v822 = vadd.f32 %v812, %v814
      %v823 = vmul.f32 %v815, %v815
      %v824 = vmul.f32 %v816, %v816
      %v825 = vmul.f32 %v817, %v817
      %v826 = vmul.f32 %v818, %v818
      %v827 = vmul.f32 %v819, %v819
      %v828 = vmul.f32 %v820, %v820
      %v829 = vmul.f32 %v821, %v821
      %v830 = vmul.f32 %v822, %v822
      %v839 = vlaneseq
      %v840 = vand.u32 %v839, 127
      %v841 = vlaneseq
      %v842 = vshrl.u32 %v841, 7
      %v843 = vsub.s32 %v840, %v842
      %v844 = vrot.slane %v823, %v843
      %v845 = vlaneseq
      %v846 = vshrl.u32 %v845, 7
      %v847 = vsub.s32 %v840, %v846
      %v848 = vrot.slane %v824, %v847
      %v849 = vlaneseq
      %v850 = vshrl.u32 %v849, 7
      %v851 = vsub.s32 %v840, %v850
      %v852 = vrot.slane %v825, %v851
      %v853 = vlaneseq
      %v854 = vshrl.u32 %v853, 7
      %v855 = vsub.s32 %v840, %v854
      %v856 = vrot.slane %v826, %v855
      %v857 = vlaneseq
      %v858 = vshrl.u32 %v857, 7
      %v859 = vsub.s32 %v840, %v858
      %v860 = vrot.slane %v827, %v859
      %v861 = vlaneseq
      %v862 = vshrl.u32 %v861, 7
      %v863 = vsub.s32 %v840, %v862
      %v864 = vrot.slane %v828, %v863
      %v865 = vlaneseq
      %v866 = vshrl.u32 %v865, 7
      %v867 = vsub.s32 %v840, %v866
      %v868 = vrot.slane %v829, %v867
      %v869 = vlaneseq
      %v870 = vshrl.u32 %v869, 7
      %v871 = vsub.s32 %v840, %v870
      %v872 = vrot.slane %v830, %v871
      %vm873 = vcmask 1041409
      %v874 = vsel %vm873, %v848, %v844
      %vm875 = vcmask 1042434
      %v876 = vsel %vm875, %v852, %v874
      %vm877 = vcmask 1043459
      %v878 = vsel %vm877, %v856, %v876
      %vm879 = vcmask 1044484
      %v880 = vsel %vm879, %v860, %v878
      %vm881 = vcmask 1045509
      %v882 = vsel %vm881, %v864, %v880
      %vm883 = vcmask 1046534
      %v884 = vsel %vm883, %v868, %v882
      %vm885 = vcmask 1047559
      %v886 = vsel %vm885, %v872, %v884
      %v888 = vsel %vm546, %v886, 0.0
      %889 = vadd.xlane.f32.xlu0 %v888
      %v890 = vpop.xlane.xlu0 %889
      %v891 = vrsqrt.pop %v890
      %v892 = vmul.f32 %v890, %v891
      %vm893 = vcmp.eq.f32.partialorder %v890, inf
      %v894 = vsel %vm893, %v890, %v892
      %vm895 = vcmp.eq.f32.partialorder %v890, 0.0
      %v896 = vand.u32 %v890, 2147483648
      %v897 = vsel %vm895, %v896, %v894
      %v898 = vmax.f32 %v897, 1e-12
      %v900 = vlaneseq
      %v901 = vshrl.u32 %v900, 7
      %v902 = vsub.s32 0, %v901
      %v903 = vrot.slane %v898, %v902
      %v904 = vlaneseq
      %v905 = vshrl.u32 %v904, 7
      %v906 = vsub.s32 1, %v905
      %v907 = vrot.slane %v898, %v906
      %v908 = vlaneseq
      %v909 = vshrl.u32 %v908, 7
      %v910 = vsub.s32 2, %v909
      %v911 = vrot.slane %v898, %v910
      %v912 = vlaneseq
      %v913 = vshrl.u32 %v912, 7
      %v914 = vsub.s32 3, %v913
      %v915 = vrot.slane %v898, %v914
      %v916 = vlaneseq
      %v917 = vshrl.u32 %v916, 7
      %v918 = vsub.s32 4, %v917
      %v919 = vrot.slane %v898, %v918
      %v920 = vlaneseq
      %v921 = vshrl.u32 %v920, 7
      %v922 = vsub.s32 5, %v921
      %v923 = vrot.slane %v898, %v922
      %v924 = vlaneseq
      %v925 = vshrl.u32 %v924, 7
      %v926 = vsub.s32 6, %v925
      %v927 = vrot.slane %v898, %v926
      %v928 = vlaneseq
      %v929 = vshrl.u32 %v928, 7
      %v930 = vsub.s32 7, %v929
      %v931 = vrot.slane %v898, %v930
      %v940 = vrcp.pop %v903
      %v941 = vmul.f32 %v815, %v940
      %v942 = vrcp.pop %v907
      %v943 = vmul.f32 %v816, %v942
      %v944 = vrcp.pop %v911
      %v945 = vmul.f32 %v817, %v944
      %v946 = vrcp.pop %v915
      %v947 = vmul.f32 %v818, %v946
      %v948 = vrcp.pop %v919
      %v949 = vmul.f32 %v819, %v948
      %v950 = vrcp.pop %v923
      %v951 = vmul.f32 %v820, %v950
      %v952 = vrcp.pop %v927
      %v953 = vmul.f32 %v821, %v952
      %v954 = vrcp.pop %v931
      %v955 = vmul.f32 %v822, %v954
      %964 = vset.pattern.permute.xlu0 0
      %965 = vperm.xlu0 %964, %v941
      %v966 = vpop.permute.xlu0 %965
      %967 = vset.pattern.permute.xlu0 0
      %968 = vperm.xlu0 %967, %v943
      %v969 = vpop.permute.xlu0 %968
      %970 = vset.pattern.permute.xlu0 0
      %971 = vperm.xlu0 %970, %v945
      %v972 = vpop.permute.xlu0 %971
      %973 = vset.pattern.permute.xlu0 0
      %974 = vperm.xlu0 %973, %v947
      %v975 = vpop.permute.xlu0 %974
      %976 = vset.pattern.permute.xlu0 0
      %977 = vperm.xlu0 %976, %v949
      %v978 = vpop.permute.xlu0 %977
      %979 = vset.pattern.permute.xlu0 0
      %980 = vperm.xlu0 %979, %v951
      %v981 = vpop.permute.xlu0 %980
      %982 = vset.pattern.permute.xlu0 0
      %983 = vperm.xlu0 %982, %v953
      %v984 = vpop.permute.xlu0 %983
      %985 = vset.pattern.permute.xlu0 0
      %986 = vperm.xlu0 %985, %v955
      %v987 = vpop.permute.xlu0 %986
      %v988 = vlaneseq
      %v989 = vshrl.u32 %v988, 7
      %v990 = vsub.s32 %v840, %v989
      %v991 = vrot.slane %v966, %v990
      %v992 = vlaneseq
      %v993 = vshrl.u32 %v992, 7
      %v994 = vsub.s32 %v840, %v993
      %v995 = vrot.slane %v969, %v994
      %v996 = vlaneseq
      %v997 = vshrl.u32 %v996, 7
      %v998 = vsub.s32 %v840, %v997
      %v999 = vrot.slane %v972, %v998
      %v1000 = vlaneseq
      %v1001 = vshrl.u32 %v1000, 7
      %v1002 = vsub.s32 %v840, %v1001
      %v1003 = vrot.slane %v975, %v1002
      %v1004 = vlaneseq
      %v1005 = vshrl.u32 %v1004, 7
      %v1006 = vsub.s32 %v840, %v1005
      %v1007 = vrot.slane %v978, %v1006
      %v1008 = vlaneseq
      %v1009 = vshrl.u32 %v1008, 7
      %v1010 = vsub.s32 %v840, %v1009
      %v1011 = vrot.slane %v981, %v1010
      %v1012 = vlaneseq
      %v1013 = vshrl.u32 %v1012, 7
      %v1014 = vsub.s32 %v840, %v1013
      %v1015 = vrot.slane %v984, %v1014
      %v1016 = vlaneseq
      %v1017 = vshrl.u32 %v1016, 7
      %v1018 = vsub.s32 %v840, %v1017
      %v1019 = vrot.slane %v987, %v1018
      %v1020 = vsel %vm873, %v995, %v991
      %v1021 = vsel %vm875, %v999, %v1020
      %v1022 = vsel %vm877, %v1003, %v1021
      %v1023 = vsel %vm879, %v1007, %v1022
      %v1024 = vsel %vm881, %v1011, %v1023
      %v1025 = vsel %vm883, %v1015, %v1024
      %v1026 = vsel %vm885, %v1019, %v1025
      %1028 = vst.msk [vmem:[%s422] sm:$0xff] %vm546, %v1026
      %p1029 = scmp.lt.s32.totalorder %s24, 1
      %s1030 = scalar_select %p1029, %s24, 1
      %s1031 = smul.addr %s1030, 8
      %s1032 = scalar_lea.vmem %s11, %s1031
      // Predicated region
      $region65: #{pgnn_forward.5} parent=63 // pred_check
        %p1033 = pneg %p288
      $region66: #{pgnn_forward.5} parent=63 // pred_check_branch
        %1035 = sbr.rel (%p1033) target = $region68
      $region67: #{pgnn_forward.5} parent=63 // pred_region
        _
      $region68: #{pgnn_forward.5} parent=63 // pred_fallthru
        _
    $region64: #{pgnn_forward.5} parent=5 // pred_fallthru
      _
    %p1036 = scmp.le.s32.totalorder 2, %s19
    // Predicated region
    $region69: #{pgnn_forward.5} parent=5 // pred_check
      %p1037 = pneg %p1036
    $region70: #{pgnn_forward.5} parent=5 // pred_check_branch
      %1039 = sbr.rel (%p1037) target = $region72
    $region71: #{pgnn_forward.5} parent=5 // pred_region
      %s1040 = ssub.s32 %s19, 2
      // Predicated region
      $region73: #{pgnn_forward.5} parent=71 // pred_check
        %p1041 = pneg %p294
      $region74: #{pgnn_forward.5} parent=71 // pred_check_branch
        %1043 = sbr.rel (%p1041) target = $region76
      $region75: #{pgnn_forward.5} parent=71 // pred_region
        %p1044 = scmp.lt.s32.totalorder %s25, 1
        %s1045 = scalar_select %p1044, %s25, 1
        %s1046 = smul.addr %s1045, 8
        %s1047 = scalar_lea.vmem %s11, %s1046
      $region76: #{pgnn_forward.5} parent=71 // pred_fallthru
        _
    $region72: #{pgnn_forward.5} parent=5 // pred_fallthru
      _
  $region6: #{pgnn_forward.5} parent=0 // loop_footer
    %s23 = sadd.s32 1, %s19
  $region7: #{pgnn_forward.5} parent=0 // loop_footer_branch
    %18 = sbr.rel target = $region3
  $region8: #{pgnn_forward.5} parent=0 // loop_exit
    _

</llo_original>
